<compile_context>
chip_gen: v7x
topology: tpu7x:2x2x1
jax: 0.10.0
libtpu: 0.0.40
codegen_flags: <defaults>
</compile_context>

<pallas_src>
import math
import functools

import jax
import jax.numpy as jnp
from jax import lax
from jax.experimental import pallas as pl
from jax.experimental.pallas import tpu as pltpu

F32 = jnp.float32
BF16 = jnp.bfloat16
NEG_BIG = -1e10          # Python float -> jaxpr literal (never a captured const)
LN_EPS = 1e-5


def _row_tile(m, cap=256):
    """Largest row-tile <= cap that evenly divides m (full m if small)."""
    if m <= cap:
        return m
    for t in (cap, 128, 64, 32, 16, 8):
        if m % t == 0:
            return t
    return m


# ---------------------------------------------------------------------------
# Fused MHA block: QKV proj + attention (+in-kernel mask) + O proj + add + LN
# ---------------------------------------------------------------------------

def _attn_block_kernel(xq_ref, xkv_ref, keep_ref,
                       wq_ref, bq_ref, wkv_ref, bkv_ref,
                       wo_ref, bo_ref, g_ref, beta_ref,
                       o_ref, ctx_ref, *, n_heads, scale, causal):
    xq = xq_ref[0]                     # [Tq, H] f32
    xkv = xkv_ref[0]                   # [Tk, H] f32
    keep = keep_ref[0]                 # [1, Tk] f32 (1.0 keep / 0.0 pad)

    Tq, H = xq.shape
    Tk = xkv.shape[0]
    dh = H // n_heads
    inv_h = 1.0 / float(H)

    # Fused projections: Q from x_q, concatenated K|V from x_kv (bf16 MXU, f32 acc).
    q = jnp.dot(xq.astype(BF16), wq_ref[...],
                preferred_element_type=F32) + bq_ref[...]           # [Tq, H]
    kv = jnp.dot(xkv.astype(BF16), wkv_ref[...],
                 preferred_element_type=F32) + bkv_ref[...]         # [Tk, 2H]
    k = kv[:, :H]
    v = kv[:, H:]

    # Additive mask bias on the VPU (pure arithmetic -> only jaxpr literals).
    bias = (keep - 1.0) * (-NEG_BIG)                                # [1, Tk]: 0 / -1e10
    if causal:
        qi = lax.broadcasted_iota(jnp.int32, (Tq, Tk), 0)
        ki = lax.broadcasted_iota(jnp.int32, (Tq, Tk), 1)
        bias = bias + (ki > qi).astype(F32) * NEG_BIG               # [Tq, Tk]

    for h in range(n_heads):
        lo = h * dh
        hi = lo + dh
        qh = q[:, lo:hi].astype(BF16)
        kh = k[:, lo:hi].astype(BF16)
        vh = v[:, lo:hi].astype(BF16)
        e = lax.dot_general(qh, kh, (((1,), (1,)), ((), ())),
                            preferred_element_type=F32) * scale     # [Tq, Tk]
        e = e + bias
        m = jnp.max(e, axis=-1, keepdims=True)
        p = jnp.exp(e - m)
        l = jnp.sum(p, axis=-1, keepdims=True)
        # Deferred normalization: scale the [Tq, dh] context, not the [Tq, Tk] probs.
        ctx = jnp.dot(p.astype(BF16), vh, preferred_element_type=F32)
        ctx_ref[:, lo:hi] = ctx / l

    attn_out = jnp.dot(ctx_ref[...].astype(BF16), wo_ref[...],
                       preferred_element_type=F32) + bo_ref[...]    # [Tq, H]

    # Fused residual + LayerNorm (statistics in f32, explicit 1/H literal).
    y = xq + attn_out
    mean = jnp.sum(y, axis=-1, keepdims=True) * inv_h
    var = jnp.sum((y - mean) ** 2, axis=-1, keepdims=True) * inv_h
    yn = (y - mean) * lax.rsqrt(var + LN_EPS)
    o_ref[0] = yn * g_ref[...] + beta_ref[...]


def attention_block(x_q, x_kv, kv_keep, p, ln, n_heads, causal):
    """x_q: [B,Tq,H], x_kv: [B,Tk,H], kv_keep: [B,1,Tk] -> LN(x_q + MHA(...)) [B,Tq,H]."""
    B, Tq, H = x_q.shape
    Tk = x_kv.shape[1]
    dh = H // n_heads
    scale = 1.0 / math.sqrt(dh)

    flops = 2 * B * (Tq * H * H + Tk * H * 2 * H + Tq * H * H
                     + n_heads * 2 * Tq * Tk * dh)
    bytes_accessed = 4 * (x_q.size + x_kv.size + B * Tq * H) + 2 * (2 * H * H + H * 2 * H)

    kernel = functools.partial(_attn_block_kernel, n_heads=n_heads,
                               scale=scale, causal=causal)
    return pl.pallas_call(
        kernel,
        out_shape=jax.ShapeDtypeStruct((B, Tq, H), F32),
        grid=(B,),
        in_specs=[
            pl.BlockSpec((1, Tq, H), lambda b: (b, 0, 0)),     # x_q
            pl.BlockSpec((1, Tk, H), lambda b: (b, 0, 0)),     # x_kv
            pl.BlockSpec((1, 1, Tk), lambda b: (b, 0, 0)),     # kv_keep
            pl.BlockSpec((H, H), lambda b: (0, 0)),            # w_q   (bf16)
            pl.BlockSpec((1, H), lambda b: (0, 0)),            # b_q
            pl.BlockSpec((H, 2 * H), lambda b: (0, 0)),        # w_kv  (bf16, K|V fused)
            pl.BlockSpec((1, 2 * H), lambda b: (0, 0)),        # b_kv
            pl.BlockSpec((H, H), lambda b: (0, 0)),            # w_o   (bf16)
            pl.BlockSpec((1, H), lambda b: (0, 0)),            # b_o
            pl.BlockSpec((1, H), lambda b: (0, 0)),            # LN gamma
            pl.BlockSpec((1, H), lambda b: (0, 0)),            # LN beta
        ],
        out_specs=pl.BlockSpec((1, Tq, H), lambda b: (b, 0, 0)),
        scratch_shapes=[pltpu.VMEM((Tq, H), F32)],
        compiler_params=pltpu.CompilerParams(dimension_semantics=("parallel",)),
        cost_estimate=pl.CostEstimate(flops=flops,
                                      transcendentals=B * n_heads * Tq * Tk,
                                      bytes_accessed=bytes_accessed),
    )(x_q, x_kv, kv_keep, p["wq"], p["bq"], p["wkv"], p["bkv"],
      p["wo"], p["bo"], ln["g"], ln["b"])


# ---------------------------------------------------------------------------
# Fused position-wise FFN block: ff1 + ReLU + ff2 + residual + LN (row-tiled)
# ---------------------------------------------------------------------------

def _ffn_block_kernel(x_ref, w1_ref, b1_ref, w2_ref, b2_ref, g_ref, beta_ref, o_ref):
    x = x_ref[...]                                                   # [tm, H] f32
    inv_h = 1.0 / float(x.shape[-1])
    h = jnp.dot(x.astype(BF16), w1_ref[...],
                preferred_element_type=F32) + b1_ref[...]            # [tm, P]
    h = jnp.maximum(h, 0.0)
    f = jnp.dot(h.astype(BF16), w2_ref[...],
                preferred_element_type=F32) + b2_ref[...]            # [tm, H]
    y = x + f
    mean = jnp.sum(y, axis=-1, keepdims=True) * inv_h
    var = jnp.sum((y - mean) ** 2, axis=-1, keepdims=True) * inv_h
    yn = (y - mean) * lax.rsqrt(var + LN_EPS)
    o_ref[...] = yn * g_ref[...] + beta_ref[...]


def ffn_block(x, p, ln):
    B, T, H = x.shape
    M = B * T
    P = p["w1"].shape[1]
    tm = _row_tile(M)
    y = pl.pallas_call(
        _ffn_block_kernel,
        out_shape=jax.ShapeDtypeStruct((M, H), F32),
        grid=(M // tm,),
        in_specs=[
            pl.BlockSpec((tm, H), lambda i: (i, 0)),
            pl.BlockSpec((H, P), lambda i: (0, 0)),
            pl.BlockSpec((1, P), lambda i: (0, 0)),
            pl.BlockSpec((P, H), lambda i: (0, 0)),
            pl.BlockSpec((1, H), lambda i: (0, 0)),
            pl.BlockSpec((1, H), lambda i: (0, 0)),
            pl.BlockSpec((1, H), lambda i: (0, 0)),
        ],
        out_specs=pl.BlockSpec((tm, H), lambda i: (i, 0)),
        compiler_params=pltpu.CompilerParams(dimension_semantics=("parallel",)),
        cost_estimate=pl.CostEstimate(flops=4 * M * H * P,
                                      transcendentals=0,
                                      bytes_accessed=8 * M * H + 4 * H * P),
    )(x.reshape(M, H), p["w1"], p["b1"], p["w2"], p["b2"], ln["g"], ln["b"])
    return y.reshape(B, T, H)


# ---------------------------------------------------------------------------
# Fused final projection + log_softmax (row-tiled)
# ---------------------------------------------------------------------------

def _proj_logsoftmax_kernel(x_ref, w_ref, b_ref, o_ref):
    x = x_ref[...]                                                   # [tm, H]
    logits = jnp.dot(x.astype(BF16), w_ref[...],
                     preferred_element_type=F32) + b_ref[...]        # [tm, V]
    m = jnp.max(logits, axis=-1, keepdims=True)
    s = logits - m
    lse = jnp.log(jnp.sum(jnp.exp(s), axis=-1, keepdims=True))
    o_ref[...] = s - lse


def project_logsoftmax(x, w, b):
    B, T, H = x.shape
    M = B * T
    V = w.shape[1]
    tm = _row_tile(M)
    return pl.pallas_call(
        _proj_logsoftmax_kernel,
        out_shape=jax.ShapeDtypeStruct((M, V), F32),
        grid=(M // tm,),
        in_specs=[
            pl.BlockSpec((tm, H), lambda i: (i, 0)),
            pl.BlockSpec((H, V), lambda i: (0, 0)),
            pl.BlockSpec((1, V), lambda i: (0, 0)),
        ],
        out_specs=pl.BlockSpec((tm, V), lambda i: (i, 0)),
        compiler_params=pltpu.CompilerParams(dimension_semantics=("parallel",)),
        cost_estimate=pl.CostEstimate(flops=2 * M * H * V,
                                      transcendentals=M * V,
                                      bytes_accessed=4 * (M * H + M * V) + 2 * H * V),
    )(x.reshape(M, H), w, b)


# ---------------------------------------------------------------------------
# Parameters (weights stored bf16 for the MXU; biases/LN/embeddings in f32)
# ---------------------------------------------------------------------------

def xavier_uniform(key, shape):
    fan_in, fan_out = shape
    bound = math.sqrt(6.0 / (fan_in + fan_out))
    return jax.random.uniform(key, shape, F32, -bound, bound)


def init_params(key, input_dim, output_dim, hidden, enc_layers, dec_layers,
                pf_dim, max_len=100):
    keys = iter(jax.random.split(key, 1024))

    def lin_w(i, o):
        return xavier_uniform(next(keys), (i, o)).astype(BF16)

    def attn_p(h):
        wk = lin_w(h, h)
        wv = lin_w(h, h)
        return {
            "wq": lin_w(h, h), "bq": jnp.zeros((1, h), F32),
            "wkv": jnp.concatenate([wk, wv], axis=1),      # fused K|V weight [H, 2H]
            "bkv": jnp.zeros((1, 2 * h), F32),
            "wo": lin_w(h, h), "bo": jnp.zeros((1, h), F32),
        }

    def ln_p(h):
        return {"g": jnp.ones((1, h), F32), "b": jnp.zeros((1, h), F32)}

    def ffn_p(h, p):
        return {"w1": lin_w(h, p), "b1": jnp.zeros((1, p), F32),
                "w2": lin_w(p, h), "b2": jnp.zeros((1, h), F32)}

    enc = [{"attn": attn_p(hidden), "ln1": ln_p(hidden),
            "ff": ffn_p(hidden, pf_dim), "ln2": ln_p(hidden)}
           for _ in range(enc_layers)]
    dec = [{"self_attn": attn_p(hidden), "ln1": ln_p(hidden),
            "cross_attn": attn_p(hidden), "ln2": ln_p(hidden),
            "ff": ffn_p(hidden, pf_dim), "ln3": ln_p(hidden)}
           for _ in range(dec_layers)]

    return {
        "enc_tok": xavier_uniform(next(keys), (input_dim, hidden)),
        "enc_pos": xavier_uniform(next(keys), (max_len, hidden)),
        "dec_tok": xavier_uniform(next(keys), (output_dim, hidden)),
        "dec_pos": xavier_uniform(next(keys), (max_len, hidden)),
        "enc_layers": enc,
        "dec_layers": dec,
        "prj_w": lin_w(hidden, output_dim),
        "prj_b": jnp.zeros((1, output_dim), F32),
    }


# ---------------------------------------------------------------------------
# Model forward (embedding lookup / keep-vector construction in plain JAX)
# ---------------------------------------------------------------------------

def encoder_forward(params, src, src_keep, n_heads):
    S = src.shape[1]
    H = params["enc_tok"].shape[1]
    # TODO(synk): embedding lookup uses an XLA gather (jnp.take), not a Pallas kernel.
    x = jnp.take(params["enc_tok"], src, axis=0) * math.sqrt(H)
    x = x + params["enc_pos"][:S][None, :, :]
    for lp in params["enc_layers"]:
        x = attention_block(x, x, src_keep, lp["attn"], lp["ln1"], n_heads, causal=False)
        x = ffn_block(x, lp["ff"], lp["ln2"])
    return x


def decoder_forward(params, trg, enc_src, trg_keep, src_keep, n_heads):
    T = trg.shape[1]
    H = params["dec_tok"].shape[1]
    x = jnp.take(params["dec_tok"], trg, axis=0) * math.sqrt(H)
    x = x + params["dec_pos"][:T][None, :, :]
    for lp in params["dec_layers"]:
        x = attention_block(x, x, trg_keep, lp["self_attn"], lp["ln1"],
                            n_heads, causal=True)
        x = attention_block(x, enc_src, src_keep, lp["cross_attn"], lp["ln2"],
                            n_heads, causal=False)
        x = ffn_block(x, lp["ff"], lp["ln3"])
    return x


def transformer_forward(params, src, trg, src_pad_idx, trg_pad_idx, n_heads):
    B, S = src.shape
    T = trg.shape[1]
    # make_src_mask / make_trg_mask semantics: only per-token keep vectors leave
    # the host; the pad/causal mask is rebuilt inside the attention kernels.
    src_keep = (src != src_pad_idx).astype(F32).reshape(B, 1, S)
    trg_keep = (trg != trg_pad_idx).astype(F32).reshape(B, 1, T)

    enc_src = encoder_forward(params, src, src_keep, n_heads)
    dec_out = decoder_forward(params, trg, enc_src, trg_keep, src_keep, n_heads)
    return project_logsoftmax(dec_out, params["prj_w"], params["prj_b"])  # [B*T, V]


# ---------------------------------------------------------------------------

if __name__ == "__main__":
    INPUT_DIM, OUTPUT_DIM = 16, 16
    SRC_PAD_IDX, TRG_PAD_IDX = 0, 0
    HIDDEN_DIM, LAYERS, HEADS, PF_DIM = 32, 2, 4, 64
    B, S, T = 2, 8, 8

    root = jax.random.PRNGKey(0)
    kp, ks, kt = jax.random.split(root, 3)

    params = init_params(kp, INPUT_DIM, OUTPUT_DIM, HIDDEN_DIM,
                         LAYERS, LAYERS, PF_DIM)

    src = jax.random.randint(ks, (B, S), 1, INPUT_DIM).astype(jnp.int32)
    trg = jax.random.randint(kt, (B, T), 1, OUTPUT_DIM).astype(jnp.int32)
    # introduce some padding positions
    src = src.at[:, -2:].set(SRC_PAD_IDX)
    trg = trg.at[:, -1:].set(TRG_PAD_IDX)

    out = transformer_forward(params, src, trg, SRC_PAD_IDX, TRG_PAD_IDX, HEADS)
    out = jax.block_until_ready(out)

    assert out.shape == (B * T, OUTPUT_DIM), out.shape
    assert bool(jnp.all(jnp.isfinite(out)))
    # rows of log_softmax must sum to ~1 in prob space
    assert bool(jnp.allclose(jnp.sum(jnp.exp(out), axis=-1), 1.0, atol=1e-4))
    print("KERNEL_OK")
</pallas_src>

<mosaic_0001>
module attributes {stable_mosaic.version = 11 : i64} {
  func.func @_attn_block_kernel(%arg0: i32, %arg1: memref<1x8x32xf32, #tpu.memory_space<vmem>>, %arg2: memref<1x8x32xf32, #tpu.memory_space<vmem>>, %arg3: memref<1x1x8xf32, #tpu.memory_space<vmem>>, %arg4: memref<32x32xbf16, #tpu.memory_space<vmem>>, %arg5: memref<1x32xf32, #tpu.memory_space<vmem>>, %arg6: memref<32x64xbf16, #tpu.memory_space<vmem>>, %arg7: memref<1x64xf32, #tpu.memory_space<vmem>>, %arg8: memref<32x32xbf16, #tpu.memory_space<vmem>>, %arg9: memref<1x32xf32, #tpu.memory_space<vmem>>, %arg10: memref<1x32xf32, #tpu.memory_space<vmem>>, %arg11: memref<1x32xf32, #tpu.memory_space<vmem>>, %arg12: memref<1x8x32xf32, #tpu.memory_space<vmem>>, %arg13: memref<8x32xf32, #tpu.memory_space<vmem>>) attributes {dimension_semantics = [#tpu.dimension_semantics<parallel>], iteration_bounds = array<i64: 2>, scalar_prefetch = 0 : i64, scratch_operands = 1 : i64, tpu.core_type = #tpu.core_type<tc>, window_params = [{transform_indices = @transform_0, window_bounds = array<i64: 1, 8, 32>}, {transform_indices = @transform_1, window_bounds = array<i64: 1, 8, 32>}, {transform_indices = @transform_2, window_bounds = array<i64: 1, 1, 8>}, {pipeline_mode = #tpu.pipeline_mode<synchronous>, transform_indices = @transform_3, window_bounds = array<i64: 32, 32>}, {pipeline_mode = #tpu.pipeline_mode<synchronous>, transform_indices = @transform_4, window_bounds = array<i64: 1, 32>}, {pipeline_mode = #tpu.pipeline_mode<synchronous>, transform_indices = @transform_5, window_bounds = array<i64: 32, 64>}, {pipeline_mode = #tpu.pipeline_mode<synchronous>, transform_indices = @transform_6, window_bounds = array<i64: 1, 64>}, {pipeline_mode = #tpu.pipeline_mode<synchronous>, transform_indices = @transform_7, window_bounds = array<i64: 32, 32>}, {pipeline_mode = #tpu.pipeline_mode<synchronous>, transform_indices = @transform_8, window_bounds = array<i64: 1, 32>}, {pipeline_mode = #tpu.pipeline_mode<synchronous>, transform_indices = @transform_9, window_bounds = array<i64: 1, 32>}, {pipeline_mode = #tpu.pipeline_mode<synchronous>, transform_indices = @transform_10, window_bounds = array<i64: 1, 32>}, {transform_indices = @transform_11, window_bounds = array<i64: 1, 8, 32>}]} {
    %c0 = arith.constant 0 : index
    %c0_0 = arith.constant 0 : index
    %c0_1 = arith.constant 0 : index
    %0 = vector.load %arg1[%c0, %c0_0, %c0_1] : memref<1x8x32xf32, #tpu.memory_space<vmem>>, vector<1x8x32xf32>
    %1 = vector.shape_cast %0 : vector<1x8x32xf32> to vector<8x32xf32>
    %c0_2 = arith.constant 0 : index
    %c0_3 = arith.constant 0 : index
    %c0_4 = arith.constant 0 : index
    %2 = vector.load %arg2[%c0_2, %c0_3, %c0_4] : memref<1x8x32xf32, #tpu.memory_space<vmem>>, vector<1x8x32xf32>
    %3 = vector.shape_cast %2 : vector<1x8x32xf32> to vector<8x32xf32>
    %c0_5 = arith.constant 0 : index
    %c0_6 = arith.constant 0 : index
    %c0_7 = arith.constant 0 : index
    %4 = vector.load %arg3[%c0_5, %c0_6, %c0_7] : memref<1x1x8xf32, #tpu.memory_space<vmem>>, vector<1x1x8xf32>
    %5 = vector.shape_cast %4 : vector<1x1x8xf32> to vector<1x8xf32>
    %6 = arith.truncf %1 : vector<8x32xf32> to vector<8x32xbf16>
    %c0_8 = arith.constant 0 : index
    %c0_9 = arith.constant 0 : index
    %7 = vector.load %arg4[%c0_8, %c0_9] : memref<32x32xbf16, #tpu.memory_space<vmem>>, vector<32x32xbf16>
    %cst = arith.constant dense<0.000000e+00> : vector<8x32xf32>
    %8 = tpu.matmul %6, %7, %cst {dimension_numbers = #tpu.dot_dimension_numbers<[1], [0], [0], [1], [0, 0, 1, 1], [], []>} : vector<8x32xbf16>, vector<32x32xbf16>, vector<8x32xf32> -> vector<8x32xf32>
    %c0_10 = arith.constant 0 : index
    %c0_11 = arith.constant 0 : index
    %9 = vector.load %arg5[%c0_10, %c0_11] : memref<1x32xf32, #tpu.memory_space<vmem>>, vector<1x32xf32>
    %10 = vector.broadcast %9 : vector<1x32xf32> to vector<8x32xf32>
    %11 = arith.addf %8, %10 : vector<8x32xf32>
    %12 = arith.truncf %3 : vector<8x32xf32> to vector<8x32xbf16>
    %c0_12 = arith.constant 0 : index
    %c0_13 = arith.constant 0 : index
    %13 = vector.load %arg6[%c0_12, %c0_13] : memref<32x64xbf16, #tpu.memory_space<vmem>>, vector<32x64xbf16>
    %cst_14 = arith.constant dense<0.000000e+00> : vector<8x64xf32>
    %14 = tpu.matmul %12, %13, %cst_14 {dimension_numbers = #tpu.dot_dimension_numbers<[1], [0], [0], [1], [0, 0, 1, 1], [], []>} : vector<8x32xbf16>, vector<32x64xbf16>, vector<8x64xf32> -> vector<8x64xf32>
    %c0_15 = arith.constant 0 : index
    %c0_16 = arith.constant 0 : index
    %15 = vector.load %arg7[%c0_15, %c0_16] : memref<1x64xf32, #tpu.memory_space<vmem>>, vector<1x64xf32>
    %16 = vector.broadcast %15 : vector<1x64xf32> to vector<8x64xf32>
    %17 = arith.addf %14, %16 : vector<8x64xf32>
    %18 = vector.extract_strided_slice %17 {offsets = [0, 0], sizes = [8, 32], strides = [1, 1]} : vector<8x64xf32> to vector<8x32xf32>
    %19 = vector.extract_strided_slice %17 {offsets = [0, 32], sizes = [8, 32], strides = [1, 1]} : vector<8x64xf32> to vector<8x32xf32>
    %cst_17 = arith.constant 1.000000e+00 : f32
    %20 = vector.broadcast %cst_17 : f32 to vector<1x8xf32>
    %21 = arith.subf %5, %20 : vector<1x8xf32>
    %cst_18 = arith.constant 1.000000e+10 : f32
    %22 = vector.broadcast %cst_18 : f32 to vector<1x8xf32>
    %23 = arith.mulf %21, %22 : vector<1x8xf32>
    %24 = vector.extract_strided_slice %11 {offsets = [0, 0], sizes = [8, 8], strides = [1, 1]} : vector<8x32xf32> to vector<8x8xf32>
    %25 = arith.truncf %24 : vector<8x8xf32> to vector<8x8xbf16>
    %26 = vector.extract_strided_slice %18 {offsets = [0, 0], sizes = [8, 8], strides = [1, 1]} : vector<8x32xf32> to vector<8x8xf32>
    %27 = arith.truncf %26 : vector<8x8xf32> to vector<8x8xbf16>
    %28 = vector.extract_strided_slice %19 {offsets = [0, 0], sizes = [8, 8], strides = [1, 1]} : vector<8x32xf32> to vector<8x8xf32>
    %29 = arith.truncf %28 : vector<8x8xf32> to vector<8x8xbf16>
    %cst_19 = arith.constant dense<0.000000e+00> : vector<8x8xf32>
    %30 = tpu.matmul %25, %27, %cst_19 {dimension_numbers = #tpu.dot_dimension_numbers<[1], [1], [0], [0], [0, 0, 1, 0], [], []>} : vector<8x8xbf16>, vector<8x8xbf16>, vector<8x8xf32> -> vector<8x8xf32>
    %cst_20 = arith.constant 0.353553385 : f32
    %31 = vector.broadcast %cst_20 : f32 to vector<8x8xf32>
    %32 = arith.mulf %30, %31 : vector<8x8xf32>
    %33 = vector.broadcast %23 : vector<1x8xf32> to vector<8x8xf32>
    %34 = arith.addf %32, %33 : vector<8x8xf32>
    %cst_21 = arith.constant dense<0xFF800000> : vector<8xf32>
    %35 = vector.multi_reduction <maximumf>, %34, %cst_21 [1] : vector<8x8xf32> to vector<8xf32>
    %36 = vector.shape_cast %35 : vector<8xf32> to vector<8x1xf32>
    %37 = vector.broadcast %36 : vector<8x1xf32> to vector<8x8xf32>
    %38 = arith.subf %34, %37 : vector<8x8xf32>
    %39 = math.exp %38 : vector<8x8xf32>
    %cst_22 = arith.constant dense<0.000000e+00> : vector<8xf32>
    %40 = vector.multi_reduction <add>, %39, %cst_22 [1] : vector<8x8xf32> to vector<8xf32>
    %41 = vector.shape_cast %40 : vector<8xf32> to vector<8x1xf32>
    %42 = arith.truncf %39 : vector<8x8xf32> to vector<8x8xbf16>
    %cst_23 = arith.constant dense<0.000000e+00> : vector<8x8xf32>
    %43 = tpu.matmul %42, %29, %cst_23 {dimension_numbers = #tpu.dot_dimension_numbers<[1], [0], [0], [1], [0, 0, 1, 1], [], []>} : vector<8x8xbf16>, vector<8x8xbf16>, vector<8x8xf32> -> vector<8x8xf32>
    %44 = vector.broadcast %41 : vector<8x1xf32> to vector<8x8xf32>
    %45 = arith.divf %43, %44 : vector<8x8xf32>
    %c0_24 = arith.constant 0 : index
    %c0_25 = arith.constant 0 : index
    %46 = vector.load %arg13[%c0_24, %c0_25] : memref<8x32xf32, #tpu.memory_space<vmem>>, vector<8x8xf32>
    tpu.vector_store %arg13[%c0_24, %c0_25], %45 {strides = array<i32>} : memref<8x32xf32, #tpu.memory_space<vmem>>, vector<8x8xf32>,
    %47 = vector.extract_strided_slice %11 {offsets = [0, 8], sizes = [8, 8], strides = [1, 1]} : vector<8x32xf32> to vector<8x8xf32>
    %48 = arith.truncf %47 : vector<8x8xf32> to vector<8x8xbf16>
    %49 = vector.extract_strided_slice %18 {offsets = [0, 8], sizes = [8, 8], strides = [1, 1]} : vector<8x32xf32> to vector<8x8xf32>
    %50 = arith.truncf %49 : vector<8x8xf32> to vector<8x8xbf16>
    %51 = vector.extract_strided_slice %19 {offsets = [0, 8], sizes = [8, 8], strides = [1, 1]} : vector<8x32xf32> to vector<8x8xf32>
    %52 = arith.truncf %51 : vector<8x8xf32> to vector<8x8xbf16>
    %cst_26 = arith.constant dense<0.000000e+00> : vector<8x8xf32>
    %53 = tpu.matmul %48, %50, %cst_26 {dimension_numbers = #tpu.dot_dimension_numbers<[1], [1], [0], [0], [0, 0, 1, 0], [], []>} : vector<8x8xbf16>, vector<8x8xbf16>, vector<8x8xf32> -> vector<8x8xf32>
    %cst_27 = arith.constant 0.353553385 : f32
    %54 = vector.broadcast %cst_27 : f32 to vector<8x8xf32>
    %55 = arith.mulf %53, %54 : vector<8x8xf32>
    %56 = vector.broadcast %23 : vector<1x8xf32> to vector<8x8xf32>
    %57 = arith.addf %55, %56 : vector<8x8xf32>
    %cst_28 = arith.constant dense<0xFF800000> : vector<8xf32>
    %58 = vector.multi_reduction <maximumf>, %57, %cst_28 [1] : vector<8x8xf32> to vector<8xf32>
    %59 = vector.shape_cast %58 : vector<8xf32> to vector<8x1xf32>
    %60 = vector.broadcast %59 : vector<8x1xf32> to vector<8x8xf32>
    %61 = arith.subf %57, %60 : vector<8x8xf32>
    %62 = math.exp %61 : vector<8x8xf32>
    %cst_29 = arith.constant dense<0.000000e+00> : vector<8xf32>
    %63 = vector.multi_reduction <add>, %62, %cst_29 [1] : vector<8x8xf32> to vector<8xf32>
    %64 = vector.shape_cast %63 : vector<8xf32> to vector<8x1xf32>
    %65 = arith.truncf %62 : vector<8x8xf32> to vector<8x8xbf16>
    %cst_30 = arith.constant dense<0.000000e+00> : vector<8x8xf32>
    %66 = tpu.matmul %65, %52, %cst_30 {dimension_numbers = #tpu.dot_dimension_numbers<[1], [0], [0], [1], [0, 0, 1, 1], [], []>} : vector<8x8xbf16>, vector<8x8xbf16>, vector<8x8xf32> -> vector<8x8xf32>
    %67 = vector.broadcast %64 : vector<8x1xf32> to vector<8x8xf32>
    %68 = arith.divf %66, %67 : vector<8x8xf32>
    %c0_31 = arith.constant 0 : index
    %c8 = arith.constant 8 : index
    %69 = vector.load %arg13[%c0_31, %c8] : memref<8x32xf32, #tpu.memory_space<vmem>>, vector<8x8xf32>
    tpu.vector_store %arg13[%c0_31, %c8], %68 {strides = array<i32>} : memref<8x32xf32, #tpu.memory_space<vmem>>, vector<8x8xf32>,
    %70 = vector.extract_strided_slice %11 {offsets = [0, 16], sizes = [8, 8], strides = [1, 1]} : vector<8x32xf32> to vector<8x8xf32>
    %71 = arith.truncf %70 : vector<8x8xf32> to vector<8x8xbf16>
    %72 = vector.extract_strided_slice %18 {offsets = [0, 16], sizes = [8, 8], strides = [1, 1]} : vector<8x32xf32> to vector<8x8xf32>
    %73 = arith.truncf %72 : vector<8x8xf32> to vector<8x8xbf16>
    %74 = vector.extract_strided_slice %19 {offsets = [0, 16], sizes = [8, 8], strides = [1, 1]} : vector<8x32xf32> to vector<8x8xf32>
    %75 = arith.truncf %74 : vector<8x8xf32> to vector<8x8xbf16>
    %cst_32 = arith.constant dense<0.000000e+00> : vector<8x8xf32>
    %76 = tpu.matmul %71, %73, %cst_32 {dimension_numbers = #tpu.dot_dimension_numbers<[1], [1], [0], [0], [0, 0, 1, 0], [], []>} : vector<8x8xbf16>, vector<8x8xbf16>, vector<8x8xf32> -> vector<8x8xf32>
    %cst_33 = arith.constant 0.353553385 : f32
    %77 = vector.broadcast %cst_33 : f32 to vector<8x8xf32>
    %78 = arith.mulf %76, %77 : vector<8x8xf32>
    %79 = vector.broadcast %23 : vector<1x8xf32> to vector<8x8xf32>
    %80 = arith.addf %78, %79 : vector<8x8xf32>
    %cst_34 = arith.constant dense<0xFF800000> : vector<8xf32>
    %81 = vector.multi_reduction <maximumf>, %80, %cst_34 [1] : vector<8x8xf32> to vector<8xf32>
    %82 = vector.shape_cast %81 : vector<8xf32> to vector<8x1xf32>
    %83 = vector.broadcast %82 : vector<8x1xf32> to vector<8x8xf32>
    %84 = arith.subf %80, %83 : vector<8x8xf32>
    %85 = math.exp %84 : vector<8x8xf32>
    %cst_35 = arith.constant dense<0.000000e+00> : vector<8xf32>
    %86 = vector.multi_reduction <add>, %85, %cst_35 [1] : vector<8x8xf32> to vector<8xf32>
    %87 = vector.shape_cast %86 : vector<8xf32> to vector<8x1xf32>
    %88 = arith.truncf %85 : vector<8x8xf32> to vector<8x8xbf16>
    %cst_36 = arith.constant dense<0.000000e+00> : vector<8x8xf32>
    %89 = tpu.matmul %88, %75, %cst_36 {dimension_numbers = #tpu.dot_dimension_numbers<[1], [0], [0], [1], [0, 0, 1, 1], [], []>} : vector<8x8xbf16>, vector<8x8xbf16>, vector<8x8xf32> -> vector<8x8xf32>
    %90 = vector.broadcast %87 : vector<8x1xf32> to vector<8x8xf32>
    %91 = arith.divf %89, %90 : vector<8x8xf32>
    %c0_37 = arith.constant 0 : index
    %c16 = arith.constant 16 : index
    %92 = vector.load %arg13[%c0_37, %c16] : memref<8x32xf32, #tpu.memory_space<vmem>>, vector<8x8xf32>
    tpu.vector_store %arg13[%c0_37, %c16], %91 {strides = array<i32>} : memref<8x32xf32, #tpu.memory_space<vmem>>, vector<8x8xf32>,
    %93 = vector.extract_strided_slice %11 {offsets = [0, 24], sizes = [8, 8], strides = [1, 1]} : vector<8x32xf32> to vector<8x8xf32>
    %94 = arith.truncf %93 : vector<8x8xf32> to vector<8x8xbf16>
    %95 = vector.extract_strided_slice %18 {offsets = [0, 24], sizes = [8, 8], strides = [1, 1]} : vector<8x32xf32> to vector<8x8xf32>
    %96 = arith.truncf %95 : vector<8x8xf32> to vector<8x8xbf16>
    %97 = vector.extract_strided_slice %19 {offsets = [0, 24], sizes = [8, 8], strides = [1, 1]} : vector<8x32xf32> to vector<8x8xf32>
    %98 = arith.truncf %97 : vector<8x8xf32> to vector<8x8xbf16>
    %cst_38 = arith.constant dense<0.000000e+00> : vector<8x8xf32>
    %99 = tpu.matmul %94, %96, %cst_38 {dimension_numbers = #tpu.dot_dimension_numbers<[1], [1], [0], [0], [0, 0, 1, 0], [], []>} : vector<8x8xbf16>, vector<8x8xbf16>, vector<8x8xf32> -> vector<8x8xf32>
    %cst_39 = arith.constant 0.353553385 : f32
    %100 = vector.broadcast %cst_39 : f32 to vector<8x8xf32>
    %101 = arith.mulf %99, %100 : vector<8x8xf32>
    %102 = vector.broadcast %23 : vector<1x8xf32> to vector<8x8xf32>
    %103 = arith.addf %101, %102 : vector<8x8xf32>
    %cst_40 = arith.constant dense<0xFF800000> : vector<8xf32>
    %104 = vector.multi_reduction <maximumf>, %103, %cst_40 [1] : vector<8x8xf32> to vector<8xf32>
    %105 = vector.shape_cast %104 : vector<8xf32> to vector<8x1xf32>
    %106 = vector.broadcast %105 : vector<8x1xf32> to vector<8x8xf32>
    %107 = arith.subf %103, %106 : vector<8x8xf32>
    %108 = math.exp %107 : vector<8x8xf32>
    %cst_41 = arith.constant dense<0.000000e+00> : vector<8xf32>
    %109 = vector.multi_reduction <add>, %108, %cst_41 [1] : vector<8x8xf32> to vector<8xf32>
    %110 = vector.shape_cast %109 : vector<8xf32> to vector<8x1xf32>
    %111 = arith.truncf %108 : vector<8x8xf32> to vector<8x8xbf16>
    %cst_42 = arith.constant dense<0.000000e+00> : vector<8x8xf32>
    %112 = tpu.matmul %111, %98, %cst_42 {dimension_numbers = #tpu.dot_dimension_numbers<[1], [0], [0], [1], [0, 0, 1, 1], [], []>} : vector<8x8xbf16>, vector<8x8xbf16>, vector<8x8xf32> -> vector<8x8xf32>
    %113 = vector.broadcast %110 : vector<8x1xf32> to vector<8x8xf32>
    %114 = arith.divf %112, %113 : vector<8x8xf32>
    %c0_43 = arith.constant 0 : index
    %c24 = arith.constant 24 : index
    %115 = vector.load %arg13[%c0_43, %c24] : memref<8x32xf32, #tpu.memory_space<vmem>>, vector<8x8xf32>
    tpu.vector_store %arg13[%c0_43, %c24], %114 {strides = array<i32>} : memref<8x32xf32, #tpu.memory_space<vmem>>, vector<8x8xf32>,
    %c0_44 = arith.constant 0 : index
    %c0_45 = arith.constant 0 : index
    %116 = vector.load %arg13[%c0_44, %c0_45] : memref<8x32xf32, #tpu.memory_space<vmem>>, vector<8x32xf32>
    %117 = arith.truncf %116 : vector<8x32xf32> to vector<8x32xbf16>
    %c0_46 = arith.constant 0 : index
    %c0_47 = arith.constant 0 : index
    %118 = vector.load %arg8[%c0_46, %c0_47] : memref<32x32xbf16, #tpu.memory_space<vmem>>, vector<32x32xbf16>
    %cst_48 = arith.constant dense<0.000000e+00> : vector<8x32xf32>
    %119 = tpu.matmul %117, %118, %cst_48 {dimension_numbers = #tpu.dot_dimension_numbers<[1], [0], [0], [1], [0, 0, 1, 1], [], []>} : vector<8x32xbf16>, vector<32x32xbf16>, vector<8x32xf32> -> vector<8x32xf32>
    %c0_49 = arith.constant 0 : index
    %c0_50 = arith.constant 0 : index
    %120 = vector.load %arg9[%c0_49, %c0_50] : memref<1x32xf32, #tpu.memory_space<vmem>>, vector<1x32xf32>
    %121 = vector.broadcast %120 : vector<1x32xf32> to vector<8x32xf32>
    %122 = arith.addf %119, %121 : vector<8x32xf32>
    %123 = arith.addf %1, %122 : vector<8x32xf32>
    %cst_51 = arith.constant dense<0.000000e+00> : vector<8xf32>
    %124 = vector.multi_reduction <add>, %123, %cst_51 [1] : vector<8x32xf32> to vector<8xf32>
    %125 = vector.shape_cast %124 : vector<8xf32> to vector<8x1xf32>
    %cst_52 = arith.constant 3.125000e-02 : f32
    %126 = vector.broadcast %cst_52 : f32 to vector<8x1xf32>
    %127 = arith.mulf %125, %126 : vector<8x1xf32>
    %128 = vector.broadcast %127 : vector<8x1xf32> to vector<8x32xf32>
    %129 = arith.subf %123, %128 : vector<8x32xf32>
    %130 = arith.mulf %129, %129 : vector<8x32xf32>
    %cst_53 = arith.constant dense<0.000000e+00> : vector<8xf32>
    %131 = vector.multi_reduction <add>, %130, %cst_53 [1] : vector<8x32xf32> to vector<8xf32>
    %132 = vector.shape_cast %131 : vector<8xf32> to vector<8x1xf32>
    %cst_54 = arith.constant 3.125000e-02 : f32
    %133 = vector.broadcast %cst_54 : f32 to vector<8x1xf32>
    %134 = arith.mulf %132, %133 : vector<8x1xf32>
    %135 = vector.broadcast %127 : vector<8x1xf32> to vector<8x32xf32>
    %136 = arith.subf %123, %135 : vector<8x32xf32>
    %cst_55 = arith.constant 9.99999974E-6 : f32
    %137 = vector.broadcast %cst_55 : f32 to vector<8x1xf32>
    %138 = arith.addf %134, %137 : vector<8x1xf32>
    %139 = math.rsqrt %138 : vector<8x1xf32>
    %140 = vector.broadcast %139 : vector<8x1xf32> to vector<8x32xf32>
    %141 = arith.mulf %136, %140 : vector<8x32xf32>
    %c0_56 = arith.constant 0 : index
    %c0_57 = arith.constant 0 : index
    %142 = vector.load %arg10[%c0_56, %c0_57] : memref<1x32xf32, #tpu.memory_space<vmem>>, vector<1x32xf32>
    %143 = vector.broadcast %142 : vector<1x32xf32> to vector<8x32xf32>
    %144 = arith.mulf %141, %143 : vector<8x32xf32>
    %c0_58 = arith.constant 0 : index
    %c0_59 = arith.constant 0 : index
    %145 = vector.load %arg11[%c0_58, %c0_59] : memref<1x32xf32, #tpu.memory_space<vmem>>, vector<1x32xf32>
    %146 = vector.broadcast %145 : vector<1x32xf32> to vector<8x32xf32>
    %147 = arith.addf %144, %146 : vector<8x32xf32>
    %c0_60 = arith.constant 0 : index
    %c0_61 = arith.constant 0 : index
    %c0_62 = arith.constant 0 : index
    %148 = vector.load %arg12[%c0_60, %c0_61, %c0_62] : memref<1x8x32xf32, #tpu.memory_space<vmem>>, vector<1x8x32xf32>
    %149 = vector.shape_cast %148 : vector<1x8x32xf32> to vector<8x32xf32>
    %150 = vector.shape_cast %147 : vector<8x32xf32> to vector<1x8x32xf32>
    tpu.vector_store %arg12[%c0_60, %c0_61, %c0_62], %150 {strides = array<i32>} : memref<1x8x32xf32, #tpu.memory_space<vmem>>, vector<1x8x32xf32>,
    return
  }
  func.func @transform_0(%arg0: i32) -> (i32, i32, i32) {
    %c0_i32 = arith.constant 0 : i32
    %c0_i32_0 = arith.constant 0 : i32
    %c0_i32_1 = arith.constant 0 : i32
    return %arg0, %c0_i32, %c0_i32_0 : i32, i32, i32
  }
  func.func @transform_1(%arg0: i32) -> (i32, i32, i32) {
    %c0_i32 = arith.constant 0 : i32
    %c0_i32_0 = arith.constant 0 : i32
    %c0_i32_1 = arith.constant 0 : i32
    return %arg0, %c0_i32, %c0_i32_0 : i32, i32, i32
  }
  func.func @transform_2(%arg0: i32) -> (i32, i32, i32) {
    %c0_i32 = arith.constant 0 : i32
    %c0_i32_0 = arith.constant 0 : i32
    %c0_i32_1 = arith.constant 0 : i32
    return %arg0, %c0_i32, %c0_i32_0 : i32, i32, i32
  }
  func.func @transform_3(%arg0: i32) -> (i32, i32) {
    %c0_i32 = arith.constant 0 : i32
    %c0_i32_0 = arith.constant 0 : i32
    %c0_i32_1 = arith.constant 0 : i32
    return %c0_i32, %c0_i32_0 : i32, i32
  }
  func.func @transform_4(%arg0: i32) -> (i32, i32) {
    %c0_i32 = arith.constant 0 : i32
    %c0_i32_0 = arith.constant 0 : i32
    %c0_i32_1 = arith.constant 0 : i32
    return %c0_i32, %c0_i32_0 : i32, i32
  }
  func.func @transform_5(%arg0: i32) -> (i32, i32) {
    %c0_i32 = arith.constant 0 : i32
    %c0_i32_0 = arith.constant 0 : i32
    %c0_i32_1 = arith.constant 0 : i32
    return %c0_i32, %c0_i32_0 : i32, i32
  }
  func.func @transform_6(%arg0: i32) -> (i32, i32) {
    %c0_i32 = arith.constant 0 : i32
    %c0_i32_0 = arith.constant 0 : i32
    %c0_i32_1 = arith.constant 0 : i32
    return %c0_i32, %c0_i32_0 : i32, i32
  }
  func.func @transform_7(%arg0: i32) -> (i32, i32) {
    %c0_i32 = arith.constant 0 : i32
    %c0_i32_0 = arith.constant 0 : i32
    %c0_i32_1 = arith.constant 0 : i32
    return %c0_i32, %c0_i32_0 : i32, i32
  }
  func.func @transform_8(%arg0: i32) -> (i32, i32) {
    %c0_i32 = arith.constant 0 : i32
    %c0_i32_0 = arith.constant 0 : i32
    %c0_i32_1 = arith.constant 0 : i32
    return %c0_i32, %c0_i32_0 : i32, i32
  }
  func.func @transform_9(%arg0: i32) -> (i32, i32) {
    %c0_i32 = arith.constant 0 : i32
    %c0_i32_0 = arith.constant 0 : i32
    %c0_i32_1 = arith.constant 0 : i32
    return %c0_i32, %c0_i32_0 : i32, i32
  }
  func.func @transform_10(%arg0: i32) -> (i32, i32) {
    %c0_i32 = arith.constant 0 : i32
    %c0_i32_0 = arith.constant 0 : i32
    %c0_i32_1 = arith.constant 0 : i32
    return %c0_i32, %c0_i32_0 : i32, i32
  }
  func.func @transform_11(%arg0: i32) -> (i32, i32, i32) {
    %c0_i32 = arith.constant 0 : i32
    %c0_i32_0 = arith.constant 0 : i32
    %c0_i32_1 = arith.constant 0 : i32
    return %arg0, %c0_i32, %c0_i32_0 : i32, i32, i32
  }
}

</mosaic_0001>

<llo_original>
// kernel: tpu_custom_call.1
$region0: #{tpu_custom_call.1}
  #allocation0 [shape = 'u32[]', space=smem, size = 0x4, offset = 0x4, fixed_abs, tag = 'smem constant byte address 0x4 - core index']
  #allocation1 [shape = 'u32[144,128]{1,0:T(1,128)}', space=vmem, size = 0x12000, scoped, tag = 'internal scratch']
  #allocation2 [shape = 'f32[8,32]{1,0:T(8,128)}', space=vmem, size = 0x1000, scoped, tag = 'scratch operand']
  %s0 = inlined_call_operand.hbm [shape: f32[2,8,32], index: 0, kind: input, shape index: {}]
  %s1 = inlined_call_operand.hbm [shape: f32[2,8,32], index: 1, kind: input, shape index: {}]
  %s2 = inlined_call_operand.vmem [shape: f32[2,1,8], index: 2, kind: input, shape index: {}]
  %s3 = inlined_call_operand.hbm [shape: bf16[32,32], index: 3, kind: input, shape index: {}]
  %s4 = inlined_call_operand.hbm [shape: f32[1,32], index: 4, kind: input, shape index: {}]
  %s5 = inlined_call_operand.vmem [shape: bf16[32,64], index: 5, kind: input, shape index: {}]
  %s6 = inlined_call_operand.vmem [shape: f32[1,64], index: 6, kind: input, shape index: {}]
  %s7 = inlined_call_operand.hbm [shape: bf16[32,32], index: 7, kind: input, shape index: {}]
  %s8 = inlined_call_operand.vmem [shape: f32[1,32], index: 8, kind: input, shape index: {}]
  %s9 = inlined_call_operand.vmem [shape: f32[1,32], index: 9, kind: input, shape index: {}]
  %s10 = inlined_call_operand.vmem [shape: f32[1,32], index: 10, kind: input, shape index: {}]
  %s11 = inlined_call_operand.hbm [shape: f32[2,8,32], index: 11, kind: output, shape index: {}]
  %s12 = sld [smem:[#allocation0]]
  $region97: #{tpu_custom_call.1} parent=0
    _
  %s14 = ssub.s32 1, %s12
  %s15 = scalar_select 0, %s14, %s12
  $region1: #{tpu_custom_call.1} parent=0
    #allocation3 [shape = 'u8[8192]{0}', space=vmem, size = 0x2000, scoped, tag = 'input window, operand 0']
    #allocation4 [shape = 's32[2]{0}', space=sflag, size = 0x8, scoped, tag = 'scoped memory for tpu_custom_call.1']
    #allocation5 [shape = 's32[2]{0}', space=sflag, size = 0x8, scoped, tag = 'scoped memory for tpu_custom_call.1']
    #allocation6 [shape = 'u8[8192]{0}', space=vmem, size = 0x2000, scoped, tag = 'input window, operand 1']
    #allocation7 [shape = 's32[2]{0}', space=sflag, size = 0x8, scoped, tag = 'scoped memory for tpu_custom_call.1']
    #allocation8 [shape = 'u8[8192]{0}', space=vmem, size = 0x2000, scoped, tag = 'input window, operand 3, single buffered']
    #allocation9 [shape = 'u8[512]{0}', space=vmem, size = 0x400, scoped, tag = 'input window, operand 4, single buffered']
    #allocation10 [shape = 's32[1]{0}', space=sflag, size = 0x4, scoped, tag = 'scoped memory for tpu_custom_call.1']
    #allocation11 [shape = 'u8[8192]{0}', space=vmem, size = 0x2000, scoped, tag = 'input window, operand 7, single buffered']
    #allocation12 [shape = 'u8[8192]{0}', space=vmem, size = 0x2000, scoped, tag = 'output window, operand 0']
    %16 = vsyncpa [#allocation4], 0
    %s17 = scalar_lea.sflag [#allocation4], 1
    %18 = vsyncpa %s17, 0
    %19 = vsyncpa [#allocation7], 0
    %s20 = scalar_lea.sflag [#allocation7], 1
    %21 = vsyncpa %s20, 0
    %22 = vsyncpa [#allocation10], 0
    %23 = vsyncpa [#allocation5], 0
    %s24 = scalar_lea.sflag [#allocation5], 1
    %25 = vsyncpa %s24, 0
    loop: start=0, step=1, limit=4
    $region2: #{tpu_custom_call.1} parent=1 // loop_pre_header
      _
    $region3: #{tpu_custom_call.1} parent=1 // loop_header
      %s27 = sphi 0, %s31
      %p28 = scmp.ge.s32.totalorder %s27, 4
      %s37 = sphi 0, %s39
      %s40 = sphi 0, %s37
      %s41 = sphi 0, %s40
      %s57 = sphi 0, %s41
      %s63 = sphi 0, %s65
      %s66 = sphi 0, %s63
      %s67 = sphi 0, %s66
      %s83 = sphi 0, %s67
      %s89 = sphi 0, %s91
      %s92 = sphi 0, %s89
      %s93 = sphi 0, %s92
      %s109 = sphi 0, %s93
      %s113 = sphi 0, %s113
      %s115 = sphi 0, %s113
      %s116 = sphi 0, %s115
      %s130 = sphi 0, %s116
      %s134 = sphi 0, %s134
      %s136 = sphi 0, %s134
      %s137 = sphi 0, %s136
      %s151 = sphi 0, %s137
      %s155 = sphi 0, %s155
      %s157 = sphi 0, %s155
      %s158 = sphi 0, %s157
      %s172 = sphi 0, %s158
      %s176 = sphi 0, %s176
      %s178 = sphi 0, %s176
      %s179 = sphi 0, %s178
      %s193 = sphi 0, %s179
      %s197 = sphi 0, %s197
      %s199 = sphi 0, %s197
      %s200 = sphi 0, %s199
      %s214 = sphi 0, %s200
      %s218 = sphi 0, %s218
      %s220 = sphi 0, %s218
      %s221 = sphi 0, %s220
      %s235 = sphi 0, %s221
      %s239 = sphi 0, %s239
      %s241 = sphi 0, %s239
      %s242 = sphi 0, %s241
      %s256 = sphi 0, %s242
      %s260 = sphi 0, %s260
      %s262 = sphi 0, %s260
      %s263 = sphi 0, %s262
      %s277 = sphi 0, %s263
      %s283 = sphi 0, %s285
      %s286 = sphi 0, %s283
      %s287 = sphi 0, %s286
      %s303 = sphi 0, %s287
    $region4: #{tpu_custom_call.1} parent=1 // loop_header_branch
      %30 = sbr.rel (%p28) target = $region8
    $region5: #{tpu_custom_call.1} parent=1 // loop_body
      %s32 = ssub.s32 %s27, 1
      %s33 = ssub.s32 %s27, 2
      %s34 = sadd.s32 %s27, 1
      %s35 = ssub.s32 %s27, %s34
      %p36 = scmp.eq.s32.totalorder %s35, 0
      %s38 = sadd.s32 %s37, 1
      %s39 = scalar_select %p36, %s37, %s38
      %p42 = pneg %p36
      %p43 = scmp.eq.s32.totalorder %s27, 1
      %p44 = por %p42, %p43
      %p45 = scmp.ne.s32.totalorder %s37, %s40
      %p46 = scmp.eq.s32.totalorder %s27, 0
      %p47 = por %p45, %p46
      %p48 = scmp.ne.s32.totalorder %s37, %s40
      %p49 = scmp.eq.s32.totalorder %s32, 1
      %p50 = por %p48, %p49
      %p51 = scmp.ne.s32.totalorder %s40, %s41
      %p52 = scmp.eq.s32.totalorder %s32, 0
      %p53 = por %p51, %p52
      %p54 = scmp.ne.s32.totalorder %s40, %s41
      %p55 = scmp.eq.s32.totalorder %s33, 1
      %p56 = por %p54, %p55
      %p58 = scmp.ne.s32.totalorder %s41, %s57
      %p59 = scmp.eq.s32.totalorder %s33, 0
      %p60 = por %p58, %p59
      %s61 = ssub.s32 %s27, %s34
      %p62 = scmp.eq.s32.totalorder %s61, 0
      %s64 = sadd.s32 %s63, 1
      %s65 = scalar_select %p62, %s63, %s64
      %p68 = pneg %p62
      %p69 = scmp.eq.s32.totalorder %s27, 1
      %p70 = por %p68, %p69
      %p71 = scmp.ne.s32.totalorder %s63, %s66
      %p72 = scmp.eq.s32.totalorder %s27, 0
      %p73 = por %p71, %p72
      %p74 = scmp.ne.s32.totalorder %s63, %s66
      %p75 = scmp.eq.s32.totalorder %s32, 1
      %p76 = por %p74, %p75
      %p77 = scmp.ne.s32.totalorder %s66, %s67
      %p78 = scmp.eq.s32.totalorder %s32, 0
      %p79 = por %p77, %p78
      %p80 = scmp.ne.s32.totalorder %s66, %s67
      %p81 = scmp.eq.s32.totalorder %s33, 1
      %p82 = por %p80, %p81
      %p84 = scmp.ne.s32.totalorder %s67, %s83
      %p85 = scmp.eq.s32.totalorder %s33, 0
      %p86 = por %p84, %p85
      %s87 = ssub.s32 %s27, %s34
      %p88 = scmp.eq.s32.totalorder %s87, 0
      %s90 = sadd.s32 %s89, 1
      %s91 = scalar_select %p88, %s89, %s90
      %p94 = pneg %p88
      %p95 = scmp.eq.s32.totalorder %s27, 1
      %p96 = por %p94, %p95
      %p97 = scmp.ne.s32.totalorder %s89, %s92
      %p98 = scmp.eq.s32.totalorder %s27, 0
      %p99 = por %p97, %p98
      %p100 = scmp.ne.s32.totalorder %s89, %s92
      %p101 = scmp.eq.s32.totalorder %s32, 1
      %p102 = por %p100, %p101
      %p103 = scmp.ne.s32.totalorder %s92, %s93
      %p104 = scmp.eq.s32.totalorder %s32, 0
      %p105 = por %p103, %p104
      %p106 = scmp.ne.s32.totalorder %s92, %s93
      %p107 = scmp.eq.s32.totalorder %s33, 1
      %p108 = por %p106, %p107
      %p110 = scmp.ne.s32.totalorder %s93, %s109
      %p111 = scmp.eq.s32.totalorder %s33, 0
      %p112 = por %p110, %p111
      %s114 = sadd.s32 %s113, 1
      %p117 = scmp.eq.s32.totalorder %s27, 1
      %p118 = scmp.ne.s32.totalorder %s113, %s115
      %p119 = scmp.eq.s32.totalorder %s27, 0
      %p120 = por %p118, %p119
      %p121 = scmp.ne.s32.totalorder %s113, %s115
      %p122 = scmp.eq.s32.totalorder %s32, 1
      %p123 = por %p121, %p122
      %p124 = scmp.ne.s32.totalorder %s115, %s116
      %p125 = scmp.eq.s32.totalorder %s32, 0
      %p126 = por %p124, %p125
      %p127 = scmp.ne.s32.totalorder %s115, %s116
      %p128 = scmp.eq.s32.totalorder %s33, 1
      %p129 = por %p127, %p128
      %p131 = scmp.ne.s32.totalorder %s116, %s130
      %p132 = scmp.eq.s32.totalorder %s33, 0
      %p133 = por %p131, %p132
      %s135 = sadd.s32 %s134, 1
      %p138 = scmp.eq.s32.totalorder %s27, 1
      %p139 = scmp.ne.s32.totalorder %s134, %s136
      %p140 = scmp.eq.s32.totalorder %s27, 0
      %p141 = por %p139, %p140
      %p142 = scmp.ne.s32.totalorder %s134, %s136
      %p143 = scmp.eq.s32.totalorder %s32, 1
      %p144 = por %p142, %p143
      %p145 = scmp.ne.s32.totalorder %s136, %s137
      %p146 = scmp.eq.s32.totalorder %s32, 0
      %p147 = por %p145, %p146
      %p148 = scmp.ne.s32.totalorder %s136, %s137
      %p149 = scmp.eq.s32.totalorder %s33, 1
      %p150 = por %p148, %p149
      %p152 = scmp.ne.s32.totalorder %s137, %s151
      %p153 = scmp.eq.s32.totalorder %s33, 0
      %p154 = por %p152, %p153
      %s156 = sadd.s32 %s155, 1
      %p159 = scmp.eq.s32.totalorder %s27, 1
      %p160 = scmp.ne.s32.totalorder %s155, %s157
      %p161 = scmp.eq.s32.totalorder %s27, 0
      %p162 = por %p160, %p161
      %p163 = scmp.ne.s32.totalorder %s155, %s157
      %p164 = scmp.eq.s32.totalorder %s32, 1
      %p165 = por %p163, %p164
      %p166 = scmp.ne.s32.totalorder %s157, %s158
      %p167 = scmp.eq.s32.totalorder %s32, 0
      %p168 = por %p166, %p167
      %p169 = scmp.ne.s32.totalorder %s157, %s158
      %p170 = scmp.eq.s32.totalorder %s33, 1
      %p171 = por %p169, %p170
      %p173 = scmp.ne.s32.totalorder %s158, %s172
      %p174 = scmp.eq.s32.totalorder %s33, 0
      %p175 = por %p173, %p174
      %s177 = sadd.s32 %s176, 1
      %p180 = scmp.eq.s32.totalorder %s27, 1
      %p181 = scmp.ne.s32.totalorder %s176, %s178
      %p182 = scmp.eq.s32.totalorder %s27, 0
      %p183 = por %p181, %p182
      %p184 = scmp.ne.s32.totalorder %s176, %s178
      %p185 = scmp.eq.s32.totalorder %s32, 1
      %p186 = por %p184, %p185
      %p187 = scmp.ne.s32.totalorder %s178, %s179
      %p188 = scmp.eq.s32.totalorder %s32, 0
      %p189 = por %p187, %p188
      %p190 = scmp.ne.s32.totalorder %s178, %s179
      %p191 = scmp.eq.s32.totalorder %s33, 1
      %p192 = por %p190, %p191
      %p194 = scmp.ne.s32.totalorder %s179, %s193
      %p195 = scmp.eq.s32.totalorder %s33, 0
      %p196 = por %p194, %p195
      %s198 = sadd.s32 %s197, 1
      %p201 = scmp.eq.s32.totalorder %s27, 1
      %p202 = scmp.ne.s32.totalorder %s197, %s199
      %p203 = scmp.eq.s32.totalorder %s27, 0
      %p204 = por %p202, %p203
      %p205 = scmp.ne.s32.totalorder %s197, %s199
      %p206 = scmp.eq.s32.totalorder %s32, 1
      %p207 = por %p205, %p206
      %p208 = scmp.ne.s32.totalorder %s199, %s200
      %p209 = scmp.eq.s32.totalorder %s32, 0
      %p210 = por %p208, %p209
      %p211 = scmp.ne.s32.totalorder %s199, %s200
      %p212 = scmp.eq.s32.totalorder %s33, 1
      %p213 = por %p211, %p212
      %p215 = scmp.ne.s32.totalorder %s200, %s214
      %p216 = scmp.eq.s32.totalorder %s33, 0
      %p217 = por %p215, %p216
      %s219 = sadd.s32 %s218, 1
      %p222 = scmp.eq.s32.totalorder %s27, 1
      %p223 = scmp.ne.s32.totalorder %s218, %s220
      %p224 = scmp.eq.s32.totalorder %s27, 0
      %p225 = por %p223, %p224
      %p226 = scmp.ne.s32.totalorder %s218, %s220
      %p227 = scmp.eq.s32.totalorder %s32, 1
      %p228 = por %p226, %p227
      %p229 = scmp.ne.s32.totalorder %s220, %s221
      %p230 = scmp.eq.s32.totalorder %s32, 0
      %p231 = por %p229, %p230
      %p232 = scmp.ne.s32.totalorder %s220, %s221
      %p233 = scmp.eq.s32.totalorder %s33, 1
      %p234 = por %p232, %p233
      %p236 = scmp.ne.s32.totalorder %s221, %s235
      %p237 = scmp.eq.s32.totalorder %s33, 0
      %p238 = por %p236, %p237
      %s240 = sadd.s32 %s239, 1
      %p243 = scmp.eq.s32.totalorder %s27, 1
      %p244 = scmp.ne.s32.totalorder %s239, %s241
      %p245 = scmp.eq.s32.totalorder %s27, 0
      %p246 = por %p244, %p245
      %p247 = scmp.ne.s32.totalorder %s239, %s241
      %p248 = scmp.eq.s32.totalorder %s32, 1
      %p249 = por %p247, %p248
      %p250 = scmp.ne.s32.totalorder %s241, %s242
      %p251 = scmp.eq.s32.totalorder %s32, 0
      %p252 = por %p250, %p251
      %p253 = scmp.ne.s32.totalorder %s241, %s242
      %p254 = scmp.eq.s32.totalorder %s33, 1
      %p255 = por %p253, %p254
      %p257 = scmp.ne.s32.totalorder %s242, %s256
      %p258 = scmp.eq.s32.totalorder %s33, 0
      %p259 = por %p257, %p258
      %s261 = sadd.s32 %s260, 1
      %p264 = scmp.eq.s32.totalorder %s27, 1
      %p265 = scmp.ne.s32.totalorder %s260, %s262
      %p266 = scmp.eq.s32.totalorder %s27, 0
      %p267 = por %p265, %p266
      %p268 = scmp.ne.s32.totalorder %s260, %s262
      %p269 = scmp.eq.s32.totalorder %s32, 1
      %p270 = por %p268, %p269
      %p271 = scmp.ne.s32.totalorder %s262, %s263
      %p272 = scmp.eq.s32.totalorder %s32, 0
      %p273 = por %p271, %p272
      %p274 = scmp.ne.s32.totalorder %s262, %s263
      %p275 = scmp.eq.s32.totalorder %s33, 1
      %p276 = por %p274, %p275
      %p278 = scmp.ne.s32.totalorder %s263, %s277
      %p279 = scmp.eq.s32.totalorder %s33, 0
      %p280 = por %p278, %p279
      %s281 = ssub.s32 %s27, %s34
      %p282 = scmp.eq.s32.totalorder %s281, 0
      %s284 = sadd.s32 %s283, 1
      %s285 = scalar_select %p282, %s283, %s284
      %p288 = pneg %p282
      %p289 = scmp.eq.s32.totalorder %s27, 1
      %p290 = por %p288, %p289
      %p291 = scmp.ne.s32.totalorder %s283, %s286
      %p292 = scmp.eq.s32.totalorder %s27, 0
      %p293 = por %p291, %p292
      %p294 = scmp.ne.s32.totalorder %s283, %s286
      %p295 = scmp.eq.s32.totalorder %s32, 1
      %p296 = por %p294, %p295
      %p297 = scmp.ne.s32.totalorder %s286, %s287
      %p298 = scmp.eq.s32.totalorder %s32, 0
      %p299 = por %p297, %p298
      %p300 = scmp.ne.s32.totalorder %s286, %s287
      %p301 = scmp.eq.s32.totalorder %s33, 1
      %p302 = por %p300, %p301
      %p304 = scmp.ne.s32.totalorder %s287, %s303
      %p305 = scmp.eq.s32.totalorder %s33, 0
      %p306 = por %p304, %p305
      %p307 = scmp.le.s32.totalorder 1, %s27
      %p308 = scmp.lt.s32.totalorder %s27, 3
      %p309 = pnand %p307, %p308
      %p310 = pneg %p309
      // Predicated region
      $region9: #{tpu_custom_call.1} parent=5 // pred_check
        _
      $region10: #{tpu_custom_call.1} parent=5 // pred_check_branch
        %312 = sbr.rel (%p309) target = $region12
      $region11: #{tpu_custom_call.1} parent=5 // pred_region
        %s313 = ssub.s32 %s27, 1
        // Predicated region
        $region13: #{tpu_custom_call.1} parent=11 // pred_check
          %p314 = pneg %p126
        $region14: #{tpu_custom_call.1} parent=11 // pred_check_branch
          %316 = sbr.rel (%p314) target = $region16
        $region15: #{tpu_custom_call.1} parent=11 // pred_region
          %s318 = ssub.s32 256, 256
          %319 = vsyncadd [#allocation7], %s318
          %s320 = sshll.u32 [#allocation8], 4
          %s321 = int_to_ptr.vmem [resolvable:$true] %s320
          %326 = dma.hbm_to_vmem [thread:$0]  %s3, 256, %s321, [#allocation7], 64, 64, 4
        $region16: #{tpu_custom_call.1} parent=11 // pred_fallthru
          _
        // Predicated region
        $region17: #{tpu_custom_call.1} parent=11 // pred_check
          %p327 = pneg %p147
        $region18: #{tpu_custom_call.1} parent=11 // pred_check_branch
          %329 = sbr.rel (%p327) target = $region20
        $region19: #{tpu_custom_call.1} parent=11 // pred_region
          %s331 = ssub.s32 16, 16
          %332 = vsyncadd [#allocation10], %s331
          %s334 = sshll.u32 [#allocation9], 4
          %s335 = int_to_ptr.vmem [resolvable:$true] %s334
          %337 = dma.hbm_to_vmem [thread:$0]  %s4, 16, %s335, [#allocation10]
        $region20: #{tpu_custom_call.1} parent=11 // pred_fallthru
          _
        // Predicated region
        $region21: #{tpu_custom_call.1} parent=11 // pred_check
          %p338 = pneg %p168
        $region22: #{tpu_custom_call.1} parent=11 // pred_check_branch
          %340 = sbr.rel (%p338) target = $region24
        $region23: #{tpu_custom_call.1} parent=11 // pred_region
          _
        $region24: #{tpu_custom_call.1} parent=11 // pred_fallthru
          _
        // Predicated region
        $region25: #{tpu_custom_call.1} parent=11 // pred_check
          %p341 = pneg %p189
        $region26: #{tpu_custom_call.1} parent=11 // pred_check_branch
          %343 = sbr.rel (%p341) target = $region28
        $region27: #{tpu_custom_call.1} parent=11 // pred_region
          _
        $region28: #{tpu_custom_call.1} parent=11 // pred_fallthru
          _
        // Predicated region
        $region29: #{tpu_custom_call.1} parent=11 // pred_check
          %p344 = pneg %p210
        $region30: #{tpu_custom_call.1} parent=11 // pred_check_branch
          %346 = sbr.rel (%p344) target = $region32
        $region31: #{tpu_custom_call.1} parent=11 // pred_region
          %s348 = ssub.s32 256, 256
          %349 = vsyncadd [#allocation10], %s348
          %s350 = sshll.u32 [#allocation11], 4
          %s351 = int_to_ptr.vmem [resolvable:$true] %s350
          %356 = dma.hbm_to_vmem [thread:$0]  %s7, 256, %s351, [#allocation10], 64, 64, 4
        $region32: #{tpu_custom_call.1} parent=11 // pred_fallthru
          _
        // Predicated region
        $region33: #{tpu_custom_call.1} parent=11 // pred_check
          %p357 = pneg %p231
        $region34: #{tpu_custom_call.1} parent=11 // pred_check_branch
          %359 = sbr.rel (%p357) target = $region36
        $region35: #{tpu_custom_call.1} parent=11 // pred_region
          _
        $region36: #{tpu_custom_call.1} parent=11 // pred_fallthru
          _
        // Predicated region
        $region37: #{tpu_custom_call.1} parent=11 // pred_check
          %p360 = pneg %p252
        $region38: #{tpu_custom_call.1} parent=11 // pred_check_branch
          %362 = sbr.rel (%p360) target = $region40
        $region39: #{tpu_custom_call.1} parent=11 // pred_region
          _
        $region40: #{tpu_custom_call.1} parent=11 // pred_fallthru
          _
        // Predicated region
        $region41: #{tpu_custom_call.1} parent=11 // pred_check
          %p363 = pneg %p273
        $region42: #{tpu_custom_call.1} parent=11 // pred_check_branch
          %365 = sbr.rel (%p363) target = $region44
        $region43: #{tpu_custom_call.1} parent=11 // pred_region
          _
        $region44: #{tpu_custom_call.1} parent=11 // pred_fallthru
          _
      $region12: #{tpu_custom_call.1} parent=5 // pred_fallthru
        _
      %p366 = scmp.lt.s32.totalorder %s27, 2
      // Predicated region
      $region45: #{tpu_custom_call.1} parent=5 // pred_check
        %p367 = pneg %p366
      $region46: #{tpu_custom_call.1} parent=5 // pred_check_branch
        %369 = sbr.rel (%p367) target = $region48
      $region47: #{tpu_custom_call.1} parent=5 // pred_region
        // Predicated region
        $region49: #{tpu_custom_call.1} parent=47 // pred_check
          %p370 = pneg %p47
        $region50: #{tpu_custom_call.1} parent=47 // pred_check_branch
          %372 = sbr.rel (%p370) target = $region52
        $region51: #{tpu_custom_call.1} parent=47 // pred_region
          %s373 = sand.u32 %s37, 1
          %s374 = scalar_lea.sflag [#allocation4], %s373
          %s375 = sand.u32 %s37, 1
          %s376 = smul.addr %s375, 8
          %s377 = scalar_lea.vmem [#allocation3], %s376
          %s379 = ssub.s32 128, 128
          %380 = vsyncadd %s374, %s379
          %s381 = smul.addr %s27, 128
          %s382 = scalar_lea.hbm %s0, %s381
          %s384 = sshll.u32 %s377, 4
          %s385 = int_to_ptr.vmem [resolvable:$true] %s384
          %387 = dma.hbm_to_vmem [thread:$0]  %s382, 128, %s385, %s374
        $region52: #{tpu_custom_call.1} parent=47 // pred_fallthru
          _
        // Predicated region
        $region53: #{tpu_custom_call.1} parent=47 // pred_check
          %p388 = pneg %p73
        $region54: #{tpu_custom_call.1} parent=47 // pred_check_branch
          %390 = sbr.rel (%p388) target = $region56
        $region55: #{tpu_custom_call.1} parent=47 // pred_region
          %s391 = sand.u32 %s27, 1
          %s392 = scalar_lea.sflag [#allocation7], %s391
          %s393 = sand.u32 %s63, 1
          %s394 = smul.addr %s393, 8
          %s395 = scalar_lea.vmem [#allocation6], %s394
          %s397 = ssub.s32 128, 128
          %398 = vsyncadd %s392, %s397
          %s399 = smul.addr %s27, 128
          %s400 = scalar_lea.hbm %s1, %s399
          %s402 = sshll.u32 %s395, 4
          %s403 = int_to_ptr.vmem [resolvable:$true] %s402
          %405 = dma.hbm_to_vmem [thread:$0]  %s400, 128, %s403, %s392
        $region56: #{tpu_custom_call.1} parent=47 // pred_fallthru
          _
        // Predicated region
        $region57: #{tpu_custom_call.1} parent=47 // pred_check
          %p406 = pneg %p99
        $region58: #{tpu_custom_call.1} parent=47 // pred_check_branch
          %408 = sbr.rel (%p406) target = $region60
        $region59: #{tpu_custom_call.1} parent=47 // pred_region
          %p409 = scmp.lt.s32.totalorder %s27, 1
          %s410 = scalar_select %p409, %s27, 1
          %s411 = scalar_lea.vmem %s2, %s410
        $region60: #{tpu_custom_call.1} parent=47 // pred_fallthru
          _
      $region48: #{tpu_custom_call.1} parent=5 // pred_fallthru
        _
      %p412 = scmp.le.s32.totalorder 1, %s27
      %p413 = scmp.lt.s32.totalorder %s27, 3
      %p414 = pnand %p412, %p413
      %p415 = pneg %p414
      // Predicated region
      $region61: #{tpu_custom_call.1} parent=5 // pred_check
        _
      $region62: #{tpu_custom_call.1} parent=5 // pred_check_branch
        %417 = sbr.rel (%p414) target = $region64
      $region63: #{tpu_custom_call.1} parent=5 // pred_region
        %s418 = ssub.s32 %s27, 1
        %s419 = sand.u32 %s40, 1
        %s420 = scalar_lea.sflag [#allocation4], %s419
        %s421 = sand.u32 %s40, 1
        %s422 = smul.addr %s421, 8
        %s423 = scalar_lea.vmem [#allocation3], %s422
        // Predicated region
        $region65: #{tpu_custom_call.1} parent=63 // pred_check
          %p424 = pneg %p53
        $region66: #{tpu_custom_call.1} parent=63 // pred_check_branch
          %426 = sbr.rel (%p424) target = $region68
        $region67: #{tpu_custom_call.1} parent=63 // pred_region
          %427 = dma.done %s420, 128
        $region68: #{tpu_custom_call.1} parent=63 // pred_fallthru
          _
        %s428 = sand.u32 %s32, 1
        %s429 = scalar_lea.sflag [#allocation7], %s428
        %s430 = sand.u32 %s66, 1
        %s431 = smul.addr %s430, 8
        %s432 = scalar_lea.vmem [#allocation6], %s431
        // Predicated region
        $region69: #{tpu_custom_call.1} parent=63 // pred_check
          %p433 = pneg %p79
        $region70: #{tpu_custom_call.1} parent=63 // pred_check_branch
          %435 = sbr.rel (%p433) target = $region72
        $region71: #{tpu_custom_call.1} parent=63 // pred_region
          %436 = dma.done %s429, 128
        $region72: #{tpu_custom_call.1} parent=63 // pred_fallthru
          _
        // Predicated region
        $region73: #{tpu_custom_call.1} parent=63 // pred_check
          %p437 = pneg %p126
        $region74: #{tpu_custom_call.1} parent=63 // pred_check_branch
          %439 = sbr.rel (%p437) target = $region76
        $region75: #{tpu_custom_call.1} parent=63 // pred_region
          %440 = dma.done [#allocation7], 256
        $region76: #{tpu_custom_call.1} parent=63 // pred_fallthru
          _
        // Predicated region
        $region77: #{tpu_custom_call.1} parent=63 // pred_check
          %p441 = pneg %p147
        $region78: #{tpu_custom_call.1} parent=63 // pred_check_branch
          %443 = sbr.rel (%p441) target = $region80
        $region79: #{tpu_custom_call.1} parent=63 // pred_region
          %444 = dma.done [#allocation10], 16
        $region80: #{tpu_custom_call.1} parent=63 // pred_fallthru
          _
        // Predicated region
        $region81: #{tpu_custom_call.1} parent=63 // pred_check
          %p445 = pneg %p210
        $region82: #{tpu_custom_call.1} parent=63 // pred_check_branch
          %447 = sbr.rel (%p445) target = $region84
        $region83: #{tpu_custom_call.1} parent=63 // pred_region
          %448 = dma.done [#allocation10], 256
        $region84: #{tpu_custom_call.1} parent=63 // pred_fallthru
          _
        %s449 = sand.u32 %s40, 1
        %s450 = scalar_lea.sflag [#allocation4], %s449
        %s451 = sand.u32 %s40, 1
        %s452 = smul.addr %s451, 8
        %s453 = scalar_lea.vmem [#allocation3], %s452
        %p454 = pneg %p53
        %p455 = pneg %p50
        %s456 = sand.u32 %s32, 1
        %s457 = scalar_lea.sflag [#allocation7], %s456
        %s458 = sand.u32 %s66, 1
        %s459 = smul.addr %s458, 8
        %s460 = scalar_lea.vmem [#allocation6], %s459
        %p461 = pneg %p79
        %p462 = pneg %p76
        %p463 = scmp.lt.s32.totalorder %s32, 1
        %s464 = scalar_select %p463, %s32, 1
        %s465 = scalar_lea.vmem %s2, %s464
        %p466 = pneg %p105
        %p467 = pneg %p102
        %p468 = pneg %p126
        %p469 = pneg %p123
        %p470 = pneg %p147
        %p471 = pneg %p144
        %p472 = pneg %p168
        %p473 = pneg %p165
        %p474 = pneg %p189
        %p475 = pneg %p186
        %p476 = pneg %p210
        %p477 = pneg %p207
        %p478 = pneg %p231
        %p479 = pneg %p228
        %p480 = pneg %p252
        %p481 = pneg %p249
        %p482 = pneg %p273
        %p483 = pneg %p270
        %p484 = pneg %p299
        %p485 = pneg %p296
        %s486 = sand.u32 %s286, 1
        %s487 = scalar_lea.sflag [#allocation5], %s486
        %s488 = sand.u32 %s286, 1
        %s489 = smul.addr %s488, 8
        %s490 = scalar_lea.vmem [#allocation12], %s489
        %p491 = scmp.lt.s32.totalorder %s32, 1
        %s492 = scalar_select %p491, %s32, 1
        %s493 = scalar_lea.vmem %s2, %s492
        %v495 = vld [vmem:[%s423] sm:$0xff]
        %v496 = vld [vmem:[%s432] sm:$0xff]
        %v497 = vld [vmem:[%s493] sm:$0x1]
        %v498 = vpack.c.bf16 %v495, %v495
        %v499 = vld [vmem:[#allocation8] sm:$0xf]
        %v500 = vld [vmem:[#allocation8 + $0x4] sm:$0xf]
        %v501 = vld [vmem:[#allocation8 + $0x8] sm:$0xf]
        %v502 = vld [vmem:[#allocation8 + $0xc] sm:$0xf]
        %v503 = vld [vmem:[#allocation9] sm:$0x1]
        %v505 = vlaneseq
        %v506 = vshrl.u32 %v505, 7
        %v507 = vsub.s32 0, %v506
        %v508 = vrot.slane %v503, %v507
        %v514 = vunpack.c.l.b16 %v499
        %v515 = vunpack.c.l.b16 %v500
        %v516 = vunpack.c.l.b16 %v501
        %v517 = vunpack.c.l.b16 %v502
        %v518 = vpack.c.b16 %v515, %v514
        %v519 = vpack.c.b16 %v517, %v516
        %vm522 = vcmask 261120
        %v524 = vsel %vm522, %v498, 0
        %526 = vmatprep.subr.bf16.mxu0 0
        %527 = vmatpush1.bf16.msra.mxu0 %v518
        %528 = vmatprep.subr.bf16.mxu0 0
        %529 = vmatpush1.bf16.msra.mxu0 %v519
        %530 = vmatprep.subr.bf16.mxu0 0
        %531 = vmatpush1.bf16.msra.mxu0 0
        %532 = vmatprep.subr.bf16.mxu0 0
        %533 = vmatpush1.bf16.msra.mxu0 0
        %534 = vmatprep.subr.bf16.mxu0 0
        %535 = vmatpush1.bf16.msra.mxu0 0
        %536 = vmatprep.subr.bf16.mxu0 0
        %537 = vmatpush1.bf16.msra.mxu0 0
        %538 = vmatprep.subr.bf16.mxu0 0
        %539 = vmatpush1.bf16.msra.mxu0 0
        %540 = vmatprep.subr.bf16.mxu0 0
        %541 = vmatpush1.bf16.msra.mxu0 0
        %542 = vmatprep.subr.bf16.mxu0 0
        %543 = vmatpush1.bf16.msra.mxu0 0
        %544 = vmatprep.subr.bf16.mxu0 0
        %545 = vmatpush1.bf16.msra.mxu0 0
        %546 = vmatprep.subr.bf16.mxu0 0
        %547 = vmatpush1.bf16.msra.mxu0 0
        %548 = vmatprep.subr.bf16.mxu0 0
        %549 = vmatpush1.bf16.msra.mxu0 0
        %550 = vmatprep.subr.bf16.mxu0 0
        %551 = vmatpush1.bf16.msra.mxu0 0
        %552 = vmatprep.subr.bf16.mxu0 0
        %553 = vmatpush1.bf16.msra.mxu0 0
        %554 = vmatprep.subr.bf16.mxu0 0
        %555 = vmatpush1.bf16.msra.mxu0 0
        %556 = vmatprep.subr.bf16.mxu0 0
        %557 = vmatpush1.bf16.msra.mxu0 0
        %558 = vmatprep.mubr.bf16.mxu0 0
        %559 = vmatmul.mubr.bf16.gmra.mrb[0].mxu0 %v524
        %v560 = vpop.f32.mrb[0].mxu0
        %v561 = vadd.f32 %v508, %v560
        %v562 = vpop.f32.mrb[0].mxu0
        %v563 = vpop.f32.mrb[0].mxu0
        %v564 = vpop.f32.mrb[0].mxu0
        %565 = vdwg.mxu0
        %v566 = vpack.c.bf16 %v496, %v496
        %v567 = vld [vmem:[%s5] sm:$0xf]
        %v568 = vld [vmem:[%s5 + $0x4] sm:$0xf]
        %v569 = vld [vmem:[%s5 + $0x8] sm:$0xf]
        %v570 = vld [vmem:[%s5 + $0xc] sm:$0xf]
        %v571 = vld [vmem:[%s6] sm:$0x1]
        %v573 = vlaneseq
        %v574 = vshrl.u32 %v573, 7
        %v575 = vsub.s32 0, %v574
        %v576 = vrot.slane %v571, %v575
        %v582 = vunpack.c.l.b16 %v567
        %v583 = vunpack.c.l.b16 %v568
        %v584 = vunpack.c.l.b16 %v569
        %v585 = vunpack.c.l.b16 %v570
        %v586 = vpack.c.b16 %v583, %v582
        %v587 = vpack.c.b16 %v585, %v584
        %v591 = vsel %vm522, %v566, 0
        %593 = vmatprep.subr.bf16.mxu0 0
        %594 = vmatpush1.bf16.msra.mxu0 %v586
        %595 = vmatprep.subr.bf16.mxu0 0
        %596 = vmatpush1.bf16.msra.mxu0 %v587
        %597 = vmatprep.subr.bf16.mxu0 0
        %598 = vmatpush1.bf16.msra.mxu0 0
        %599 = vmatprep.subr.bf16.mxu0 0
        %600 = vmatpush1.bf16.msra.mxu0 0
        %601 = vmatprep.subr.bf16.mxu0 0
        %602 = vmatpush1.bf16.msra.mxu0 0
        %603 = vmatprep.subr.bf16.mxu0 0
        %604 = vmatpush1.bf16.msra.mxu0 0
        %605 = vmatprep.subr.bf16.mxu0 0
        %606 = vmatpush1.bf16.msra.mxu0 0
        %607 = vmatprep.subr.bf16.mxu0 0
        %608 = vmatpush1.bf16.msra.mxu0 0
        %609 = vmatprep.subr.bf16.mxu0 0
        %610 = vmatpush1.bf16.msra.mxu0 0
        %611 = vmatprep.subr.bf16.mxu0 0
        %612 = vmatpush1.bf16.msra.mxu0 0
        %613 = vmatprep.subr.bf16.mxu0 0
        %614 = vmatpush1.bf16.msra.mxu0 0
        %615 = vmatprep.subr.bf16.mxu0 0
        %616 = vmatpush1.bf16.msra.mxu0 0
        %617 = vmatprep.subr.bf16.mxu0 0
        %618 = vmatpush1.bf16.msra.mxu0 0
        %619 = vmatprep.subr.bf16.mxu0 0
        %620 = vmatpush1.bf16.msra.mxu0 0
        %621 = vmatprep.subr.bf16.mxu0 0
        %622 = vmatpush1.bf16.msra.mxu0 0
        %623 = vmatprep.subr.bf16.mxu0 0
        %624 = vmatpush1.bf16.msra.mxu0 0
        %625 = vmatprep.mubr.bf16.mxu0 0
        %626 = vmatmul.mubr.bf16.gmra.mrb[0].mxu0 %v591
        %v627 = vpop.f32.mrb[0].mxu0
        %v628 = vadd.f32 %v576, %v627
        %v629 = vpop.f32.mrb[0].mxu0
        %v630 = vpop.f32.mrb[0].mxu0
        %v631 = vpop.f32.mrb[0].mxu0
        %632 = vdwg.mxu0
        %v633 = vsub.f32 %v497, 1.0
        %v634 = vmul.f32 %v633, 1e+10
        %v635 = vpack.c.bf16 %v561, %v561
        %v636 = vpack.c.bf16 %v628, %v628
        %vm637 = vcmask 64512
        %v639 = vsel %vm637, %v635, 0
        %v642 = vsel %vm637, %v636, 0
        %644 = vmatprep.subr.bf16.mxu0 0
        %645 = vmatpush1.bf16.xpose.msra.mxu0 %v642
        %646 = vmatprep.subr.bf16.mxu0 0
        %647 = vmatpush1.bf16.xpose.msra.mxu0 0
        %648 = vmatprep.subr.bf16.mxu0 0
        %649 = vmatpush1.bf16.xpose.msra.mxu0 0
        %650 = vmatprep.subr.bf16.mxu0 0
        %651 = vmatpush1.bf16.xpose.msra.mxu0 0
        %652 = vmatprep.subr.bf16.mxu0 0
        %653 = vmatpush1.bf16.xpose.msra.mxu0 0
        %654 = vmatprep.subr.bf16.mxu0 0
        %655 = vmatpush1.bf16.xpose.msra.mxu0 0
        %656 = vmatprep.subr.bf16.mxu0 0
        %657 = vmatpush1.bf16.xpose.msra.mxu0 0
        %658 = vmatprep.subr.bf16.mxu0 0
        %659 = vmatpush1.bf16.xpose.msra.mxu0 0
        %660 = vmatprep.subr.bf16.mxu0 0
        %661 = vmatpush1.bf16.xpose.msra.mxu0 0
        %662 = vmatprep.subr.bf16.mxu0 0
        %663 = vmatpush1.bf16.xpose.msra.mxu0 0
        %664 = vmatprep.subr.bf16.mxu0 0
        %665 = vmatpush1.bf16.xpose.msra.mxu0 0
        %666 = vmatprep.subr.bf16.mxu0 0
        %667 = vmatpush1.bf16.xpose.msra.mxu0 0
        %668 = vmatprep.subr.bf16.mxu0 0
        %669 = vmatpush1.bf16.xpose.msra.mxu0 0
        %670 = vmatprep.subr.bf16.mxu0 0
        %671 = vmatpush1.bf16.xpose.msra.mxu0 0
        %672 = vmatprep.subr.bf16.mxu0 0
        %673 = vmatpush1.bf16.xpose.msra.mxu0 0
        %674 = vmatprep.subr.bf16.mxu0 0
        %675 = vmatpush1.bf16.xpose.msra.mxu0 0
        %676 = vmatprep.mubr.bf16.mxu0 0
        %677 = vmatmul.mubr.bf16.gmra.mrb[0].mxu0 %v639
        %v678 = vpop.f32.mrb[0].mxu0
        %v679 = vadd.f32 0.0, %v678
        %v680 = vpop.f32.mrb[0].mxu0
        %v681 = vpop.f32.mrb[0].mxu0
        %v682 = vpop.f32.mrb[0].mxu0
        %683 = vdwg.mxu0
        %v684 = vmul.f32 %v679, 0.35355338
        %v686 = vlaneseq
        %v687 = vshrl.u32 %v686, 7
        %v688 = vsub.s32 0, %v687
        %v689 = vrot.slane %v634, %v688
        %v691 = vadd.f32 %v684, %v689
        %v692 = vsel %vm637, %v691, -inf
        %693 = vmax.xlane.f32.xlu0 %v692
        %v694 = vpop.xlane.xlu0 %693
        %v695 = vsub.f32 %v691, %v694
        %v696 = vmul.f32 %v695, 1.442695
        %v697 = vpow.pop %v696
        %v698 = vsel %vm637, %v697, 0.0
        %699 = vadd.xlane.f32.xlu0 %v698
        %v700 = vpop.xlane.xlu0 %699
        %v701 = vpack.c.bf16 %v697, %v697
        %703 = vrot.lane.b32.xlu0 %v636, 96
        %v704 = vpop.permute.xlu0 %703
        %v706 = vsel %vm637, %v701, 0
        %vm708 = vcmask 1043456
        %v710 = vsel %vm708, %v704, 0
        %712 = vmatprep.subr.bf16.mxu0 0
        %713 = vmatpush1.bf16.msra.mxu0 %v710
        %714 = vmatprep.subr.bf16.mxu0 0
        %715 = vmatpush1.bf16.msra.mxu0 0
        %716 = vmatprep.subr.bf16.mxu0 0
        %717 = vmatpush1.bf16.msra.mxu0 0
        %718 = vmatprep.subr.bf16.mxu0 0
        %719 = vmatpush1.bf16.msra.mxu0 0
        %720 = vmatprep.subr.bf16.mxu0 0
        %721 = vmatpush1.bf16.msra.mxu0 0
        %722 = vmatprep.subr.bf16.mxu0 0
        %723 = vmatpush1.bf16.msra.mxu0 0
        %724 = vmatprep.subr.bf16.mxu0 0
        %725 = vmatpush1.bf16.msra.mxu0 0
        %726 = vmatprep.subr.bf16.mxu0 0
        %727 = vmatpush1.bf16.msra.mxu0 0
        %728 = vmatprep.subr.bf16.mxu0 0
        %729 = vmatpush1.bf16.msra.mxu0 0
        %730 = vmatprep.subr.bf16.mxu0 0
        %731 = vmatpush1.bf16.msra.mxu0 0
        %732 = vmatprep.subr.bf16.mxu0 0
        %733 = vmatpush1.bf16.msra.mxu0 0
        %734 = vmatprep.subr.bf16.mxu0 0
        %735 = vmatpush1.bf16.msra.mxu0 0
        %736 = vmatprep.subr.bf16.mxu0 0
        %737 = vmatpush1.bf16.msra.mxu0 0
        %738 = vmatprep.subr.bf16.mxu0 0
        %739 = vmatpush1.bf16.msra.mxu0 0
        %740 = vmatprep.subr.bf16.mxu0 0
        %741 = vmatpush1.bf16.msra.mxu0 0
        %742 = vmatprep.subr.bf16.mxu0 0
        %743 = vmatpush1.bf16.msra.mxu0 0
        %744 = vmatprep.mubr.bf16.mxu0 0
        %745 = vmatmul.mubr.bf16.gmra.mrb[0].mxu0 %v706
        %v746 = vpop.f32.mrb[0].mxu0
        %v747 = vadd.f32 0.0, %v746
        %v748 = vpop.f32.mrb[0].mxu0
        %v749 = vpop.f32.mrb[0].mxu0
        %v750 = vpop.f32.mrb[0].mxu0
        %751 = vdwg.mxu0
        %v752 = vrcp.pop %v700
        %v753 = vmul.f32 %v747, %v752
        %754 = vst.msk [vmem:[#allocation2] sm:$0xff] %vm637, %v753
        %756 = vrot.lane.b32.xlu0 %v635, 120
        %v757 = vpop.permute.xlu0 %756
        %758 = vrot.lane.b32.xlu0 %v636, 120
        %v759 = vpop.permute.xlu0 %758
        %v761 = vsel %vm637, %v757, 0
        %v764 = vsel %vm637, %v759, 0
        %766 = vmatprep.subr.bf16.mxu0 0
        %767 = vmatpush1.bf16.xpose.msra.mxu0 %v764
        %768 = vmatprep.subr.bf16.mxu0 0
        %769 = vmatpush1.bf16.xpose.msra.mxu0 0
        %770 = vmatprep.subr.bf16.mxu0 0
        %771 = vmatpush1.bf16.xpose.msra.mxu0 0
        %772 = vmatprep.subr.bf16.mxu0 0
        %773 = vmatpush1.bf16.xpose.msra.mxu0 0
        %774 = vmatprep.subr.bf16.mxu0 0
        %775 = vmatpush1.bf16.xpose.msra.mxu0 0
        %776 = vmatprep.subr.bf16.mxu0 0
        %777 = vmatpush1.bf16.xpose.msra.mxu0 0
        %778 = vmatprep.subr.bf16.mxu0 0
        %779 = vmatpush1.bf16.xpose.msra.mxu0 0
        %780 = vmatprep.subr.bf16.mxu0 0
        %781 = vmatpush1.bf16.xpose.msra.mxu0 0
        %782 = vmatprep.subr.bf16.mxu0 0
        %783 = vmatpush1.bf16.xpose.msra.mxu0 0
        %784 = vmatprep.subr.bf16.mxu0 0
        %785 = vmatpush1.bf16.xpose.msra.mxu0 0
        %786 = vmatprep.subr.bf16.mxu0 0
        %787 = vmatpush1.bf16.xpose.msra.mxu0 0
        %788 = vmatprep.subr.bf16.mxu0 0
        %789 = vmatpush1.bf16.xpose.msra.mxu0 0
        %790 = vmatprep.subr.bf16.mxu0 0
        %791 = vmatpush1.bf16.xpose.msra.mxu0 0
        %792 = vmatprep.subr.bf16.mxu0 0
        %793 = vmatpush1.bf16.xpose.msra.mxu0 0
        %794 = vmatprep.subr.bf16.mxu0 0
        %795 = vmatpush1.bf16.xpose.msra.mxu0 0
        %796 = vmatprep.subr.bf16.mxu0 0
        %797 = vmatpush1.bf16.xpose.msra.mxu0 0
        %798 = vmatprep.mubr.bf16.mxu0 0
        %799 = vmatmul.mubr.bf16.gmra.mrb[0].mxu0 %v761
        %v800 = vpop.f32.mrb[0].mxu0
        %v801 = vadd.f32 0.0, %v800
        %v802 = vpop.f32.mrb[0].mxu0
        %v803 = vpop.f32.mrb[0].mxu0
        %v804 = vpop.f32.mrb[0].mxu0
        %805 = vdwg.mxu0
        %v806 = vmul.f32 %v801, 0.35355338
        %v807 = vadd.f32 %v806, %v689
        %v808 = vsel %vm637, %v807, -inf
        %809 = vmax.xlane.f32.xlu0 %v808
        %v810 = vpop.xlane.xlu0 %809
        %v811 = vsub.f32 %v807, %v810
        %v812 = vmul.f32 %v811, 1.442695
        %v813 = vpow.pop %v812
        %v814 = vsel %vm637, %v813, 0.0
        %815 = vadd.xlane.f32.xlu0 %v814
        %v816 = vpop.xlane.xlu0 %815
        %v817 = vpack.c.bf16 %v813, %v813
        %818 = vrot.lane.b32.xlu0 %v636, 88
        %v819 = vpop.permute.xlu0 %818
        %v821 = vsel %vm637, %v817, 0
        %v824 = vsel %vm708, %v819, 0
        %826 = vmatprep.subr.bf16.mxu0 0
        %827 = vmatpush1.bf16.msra.mxu0 %v824
        %828 = vmatprep.subr.bf16.mxu0 0
        %829 = vmatpush1.bf16.msra.mxu0 0
        %830 = vmatprep.subr.bf16.mxu0 0
        %831 = vmatpush1.bf16.msra.mxu0 0
        %832 = vmatprep.subr.bf16.mxu0 0
        %833 = vmatpush1.bf16.msra.mxu0 0
        %834 = vmatprep.subr.bf16.mxu0 0
        %835 = vmatpush1.bf16.msra.mxu0 0
        %836 = vmatprep.subr.bf16.mxu0 0
        %837 = vmatpush1.bf16.msra.mxu0 0
        %838 = vmatprep.subr.bf16.mxu0 0
        %839 = vmatpush1.bf16.msra.mxu0 0
        %840 = vmatprep.subr.bf16.mxu0 0
        %841 = vmatpush1.bf16.msra.mxu0 0
        %842 = vmatprep.subr.bf16.mxu0 0
        %843 = vmatpush1.bf16.msra.mxu0 0
        %844 = vmatprep.subr.bf16.mxu0 0
        %845 = vmatpush1.bf16.msra.mxu0 0
        %846 = vmatprep.subr.bf16.mxu0 0
        %847 = vmatpush1.bf16.msra.mxu0 0
        %848 = vmatprep.subr.bf16.mxu0 0
        %849 = vmatpush1.bf16.msra.mxu0 0
        %850 = vmatprep.subr.bf16.mxu0 0
        %851 = vmatpush1.bf16.msra.mxu0 0
        %852 = vmatprep.subr.bf16.mxu0 0
        %853 = vmatpush1.bf16.msra.mxu0 0
        %854 = vmatprep.subr.bf16.mxu0 0
        %855 = vmatpush1.bf16.msra.mxu0 0
        %856 = vmatprep.subr.bf16.mxu0 0
        %857 = vmatpush1.bf16.msra.mxu0 0
        %858 = vmatprep.mubr.bf16.mxu0 0
        %859 = vmatmul.mubr.bf16.gmra.mrb[0].mxu0 %v821
        %v860 = vpop.f32.mrb[0].mxu0
        %v861 = vadd.f32 0.0, %v860
        %v862 = vpop.f32.mrb[0].mxu0
        %v863 = vpop.f32.mrb[0].mxu0
        %v864 = vpop.f32.mrb[0].mxu0
        %865 = vdwg.mxu0
        %v866 = vrcp.pop %v816
        %v867 = vmul.f32 %v861, %v866
        %869 = vrot.lane.b32.xlu0 %v867, 8
        %v870 = vpop.permute.xlu0 %869
        %vm872 = vcmask 130112
        %873 = vst.msk [vmem:[#allocation2] sm:$0xff] %vm872, %v870
        %874 = vrot.lane.b32.xlu0 %v635, 112
        %v875 = vpop.permute.xlu0 %874
        %876 = vrot.lane.b32.xlu0 %v636, 112
        %v877 = vpop.permute.xlu0 %876
        %v879 = vsel %vm637, %v875, 0
        %v882 = vsel %vm637, %v877, 0
        %884 = vmatprep.subr.bf16.mxu0 0
        %885 = vmatpush1.bf16.xpose.msra.mxu0 %v882
        %886 = vmatprep.subr.bf16.mxu0 0
        %887 = vmatpush1.bf16.xpose.msra.mxu0 0
        %888 = vmatprep.subr.bf16.mxu0 0
        %889 = vmatpush1.bf16.xpose.msra.mxu0 0
        %890 = vmatprep.subr.bf16.mxu0 0
        %891 = vmatpush1.bf16.xpose.msra.mxu0 0
        %892 = vmatprep.subr.bf16.mxu0 0
        %893 = vmatpush1.bf16.xpose.msra.mxu0 0
        %894 = vmatprep.subr.bf16.mxu0 0
        %895 = vmatpush1.bf16.xpose.msra.mxu0 0
        %896 = vmatprep.subr.bf16.mxu0 0
        %897 = vmatpush1.bf16.xpose.msra.mxu0 0
        %898 = vmatprep.subr.bf16.mxu0 0
        %899 = vmatpush1.bf16.xpose.msra.mxu0 0
        %900 = vmatprep.subr.bf16.mxu0 0
        %901 = vmatpush1.bf16.xpose.msra.mxu0 0
        %902 = vmatprep.subr.bf16.mxu0 0
        %903 = vmatpush1.bf16.xpose.msra.mxu0 0
        %904 = vmatprep.subr.bf16.mxu0 0
        %905 = vmatpush1.bf16.xpose.msra.mxu0 0
        %906 = vmatprep.subr.bf16.mxu0 0
        %907 = vmatpush1.bf16.xpose.msra.mxu0 0
        %908 = vmatprep.subr.bf16.mxu0 0
        %909 = vmatpush1.bf16.xpose.msra.mxu0 0
        %910 = vmatprep.subr.bf16.mxu0 0
        %911 = vmatpush1.bf16.xpose.msra.mxu0 0
        %912 = vmatprep.subr.bf16.mxu0 0
        %913 = vmatpush1.bf16.xpose.msra.mxu0 0
        %914 = vmatprep.subr.bf16.mxu0 0
        %915 = vmatpush1.bf16.xpose.msra.mxu0 0
        %916 = vmatprep.mubr.bf16.mxu0 0
        %917 = vmatmul.mubr.bf16.gmra.mrb[0].mxu0 %v879
        %v918 = vpop.f32.mrb[0].mxu0
        %v919 = vadd.f32 0.0, %v918
        %v920 = vpop.f32.mrb[0].mxu0
        %v921 = vpop.f32.mrb[0].mxu0
        %v922 = vpop.f32.mrb[0].mxu0
        %923 = vdwg.mxu0
        %v924 = vmul.f32 %v919, 0.35355338
        %v925 = vadd.f32 %v924, %v689
        %v926 = vsel %vm637, %v925, -inf
        %927 = vmax.xlane.f32.xlu0 %v926
        %v928 = vpop.xlane.xlu0 %927
        %v929 = vsub.f32 %v925, %v928
        %v930 = vmul.f32 %v929, 1.442695
        %v931 = vpow.pop %v930
        %v932 = vsel %vm637, %v931, 0.0
        %933 = vadd.xlane.f32.xlu0 %v932
        %v934 = vpop.xlane.xlu0 %933
        %v935 = vpack.c.bf16 %v931, %v931
        %936 = vrot.lane.b32.xlu0 %v636, 80
        %v937 = vpop.permute.xlu0 %936
        %v939 = vsel %vm637, %v935, 0
        %v942 = vsel %vm708, %v937, 0
        %944 = vmatprep.subr.bf16.mxu0 0
        %945 = vmatpush1.bf16.msra.mxu0 %v942
        %946 = vmatprep.subr.bf16.mxu0 0
        %947 = vmatpush1.bf16.msra.mxu0 0
        %948 = vmatprep.subr.bf16.mxu0 0
        %949 = vmatpush1.bf16.msra.mxu0 0
        %950 = vmatprep.subr.bf16.mxu0 0
        %951 = vmatpush1.bf16.msra.mxu0 0
        %952 = vmatprep.subr.bf16.mxu0 0
        %953 = vmatpush1.bf16.msra.mxu0 0
        %954 = vmatprep.subr.bf16.mxu0 0
        %955 = vmatpush1.bf16.msra.mxu0 0
        %956 = vmatprep.subr.bf16.mxu0 0
        %957 = vmatpush1.bf16.msra.mxu0 0
        %958 = vmatprep.subr.bf16.mxu0 0
        %959 = vmatpush1.bf16.msra.mxu0 0
        %960 = vmatprep.subr.bf16.mxu0 0
        %961 = vmatpush1.bf16.msra.mxu0 0
        %962 = vmatprep.subr.bf16.mxu0 0
        %963 = vmatpush1.bf16.msra.mxu0 0
        %964 = vmatprep.subr.bf16.mxu0 0
        %965 = vmatpush1.bf16.msra.mxu0 0
        %966 = vmatprep.subr.bf16.mxu0 0
        %967 = vmatpush1.bf16.msra.mxu0 0
        %968 = vmatprep.subr.bf16.mxu0 0
        %969 = vmatpush1.bf16.msra.mxu0 0
        %970 = vmatprep.subr.bf16.mxu0 0
        %971 = vmatpush1.bf16.msra.mxu0 0
        %972 = vmatprep.subr.bf16.mxu0 0
        %973 = vmatpush1.bf16.msra.mxu0 0
        %974 = vmatprep.subr.bf16.mxu0 0
        %975 = vmatpush1.bf16.msra.mxu0 0
        %976 = vmatprep.mubr.bf16.mxu0 0
        %977 = vmatmul.mubr.bf16.gmra.mrb[0].mxu0 %v939
        %v978 = vpop.f32.mrb[0].mxu0
        %v979 = vadd.f32 0.0, %v978
        %v980 = vpop.f32.mrb[0].mxu0
        %v981 = vpop.f32.mrb[0].mxu0
        %v982 = vpop.f32.mrb[0].mxu0
        %983 = vdwg.mxu0
        %v984 = vrcp.pop %v934
        %v985 = vmul.f32 %v979, %v984
        %987 = vrot.lane.b32.xlu0 %v985, 16
        %v988 = vpop.permute.xlu0 %987
        %vm990 = vcmask 195712
        %991 = vst.msk [vmem:[#allocation2] sm:$0xff] %vm990, %v988
        %992 = vrot.lane.b32.xlu0 %v635, 104
        %v993 = vpop.permute.xlu0 %992
        %994 = vrot.lane.b32.xlu0 %v636, 104
        %v995 = vpop.permute.xlu0 %994
        %v997 = vsel %vm637, %v993, 0
        %v1000 = vsel %vm637, %v995, 0
        %1002 = vmatprep.subr.bf16.mxu0 0
        %1003 = vmatpush1.bf16.xpose.msra.mxu0 %v1000
        %1004 = vmatprep.subr.bf16.mxu0 0
        %1005 = vmatpush1.bf16.xpose.msra.mxu0 0
        %1006 = vmatprep.subr.bf16.mxu0 0
        %1007 = vmatpush1.bf16.xpose.msra.mxu0 0
        %1008 = vmatprep.subr.bf16.mxu0 0
        %1009 = vmatpush1.bf16.xpose.msra.mxu0 0
        %1010 = vmatprep.subr.bf16.mxu0 0
        %1011 = vmatpush1.bf16.xpose.msra.mxu0 0
        %1012 = vmatprep.subr.bf16.mxu0 0
        %1013 = vmatpush1.bf16.xpose.msra.mxu0 0
        %1014 = vmatprep.subr.bf16.mxu0 0
        %1015 = vmatpush1.bf16.xpose.msra.mxu0 0
        %1016 = vmatprep.subr.bf16.mxu0 0
        %1017 = vmatpush1.bf16.xpose.msra.mxu0 0
        %1018 = vmatprep.subr.bf16.mxu0 0
        %1019 = vmatpush1.bf16.xpose.msra.mxu0 0
        %1020 = vmatprep.subr.bf16.mxu0 0
        %1021 = vmatpush1.bf16.xpose.msra.mxu0 0
        %1022 = vmatprep.subr.bf16.mxu0 0
        %1023 = vmatpush1.bf16.xpose.msra.mxu0 0
        %1024 = vmatprep.subr.bf16.mxu0 0
        %1025 = vmatpush1.bf16.xpose.msra.mxu0 0
        %1026 = vmatprep.subr.bf16.mxu0 0
        %1027 = vmatpush1.bf16.xpose.msra.mxu0 0
        %1028 = vmatprep.subr.bf16.mxu0 0
        %1029 = vmatpush1.bf16.xpose.msra.mxu0 0
        %1030 = vmatprep.subr.bf16.mxu0 0
        %1031 = vmatpush1.bf16.xpose.msra.mxu0 0
        %1032 = vmatprep.subr.bf16.mxu0 0
        %1033 = vmatpush1.bf16.xpose.msra.mxu0 0
        %1034 = vmatprep.mubr.bf16.mxu0 0
        %1035 = vmatmul.mubr.bf16.gmra.mrb[0].mxu0 %v997
        %v1036 = vpop.f32.mrb[0].mxu0
        %v1037 = vadd.f32 0.0, %v1036
        %v1038 = vpop.f32.mrb[0].mxu0
        %v1039 = vpop.f32.mrb[0].mxu0
        %v1040 = vpop.f32.mrb[0].mxu0
        %1041 = vdwg.mxu0
        %v1042 = vmul.f32 %v1037, 0.35355338
        %v1043 = vadd.f32 %v1042, %v689
        %v1044 = vsel %vm637, %v1043, -inf
        %1045 = vmax.xlane.f32.xlu0 %v1044
        %v1046 = vpop.xlane.xlu0 %1045
        %v1047 = vsub.f32 %v1043, %v1046
        %v1048 = vmul.f32 %v1047, 1.442695
        %v1049 = vpow.pop %v1048
        %v1050 = vsel %vm637, %v1049, 0.0
        %1051 = vadd.xlane.f32.xlu0 %v1050
        %v1052 = vpop.xlane.xlu0 %1051
        %v1053 = vpack.c.bf16 %v1049, %v1049
        %1054 = vrot.lane.b32.xlu0 %v636, 72
        %v1055 = vpop.permute.xlu0 %1054
        %v1057 = vsel %vm637, %v1053, 0
        %v1060 = vsel %vm708, %v1055, 0
        %1062 = vmatprep.subr.bf16.mxu0 0
        %1063 = vmatpush1.bf16.msra.mxu0 %v1060
        %1064 = vmatprep.subr.bf16.mxu0 0
        %1065 = vmatpush1.bf16.msra.mxu0 0
        %1066 = vmatprep.subr.bf16.mxu0 0
        %1067 = vmatpush1.bf16.msra.mxu0 0
        %1068 = vmatprep.subr.bf16.mxu0 0
        %1069 = vmatpush1.bf16.msra.mxu0 0
        %1070 = vmatprep.subr.bf16.mxu0 0
        %1071 = vmatpush1.bf16.msra.mxu0 0
        %1072 = vmatprep.subr.bf16.mxu0 0
        %1073 = vmatpush1.bf16.msra.mxu0 0
        %1074 = vmatprep.subr.bf16.mxu0 0
        %1075 = vmatpush1.bf16.msra.mxu0 0
        %1076 = vmatprep.subr.bf16.mxu0 0
        %1077 = vmatpush1.bf16.msra.mxu0 0
        %1078 = vmatprep.subr.bf16.mxu0 0
        %1079 = vmatpush1.bf16.msra.mxu0 0
        %1080 = vmatprep.subr.bf16.mxu0 0
        %1081 = vmatpush1.bf16.msra.mxu0 0
        %1082 = vmatprep.subr.bf16.mxu0 0
        %1083 = vmatpush1.bf16.msra.mxu0 0
        %1084 = vmatprep.subr.bf16.mxu0 0
        %1085 = vmatpush1.bf16.msra.mxu0 0
        %1086 = vmatprep.subr.bf16.mxu0 0
        %1087 = vmatpush1.bf16.msra.mxu0 0
        %1088 = vmatprep.subr.bf16.mxu0 0
        %1089 = vmatpush1.bf16.msra.mxu0 0
        %1090 = vmatprep.subr.bf16.mxu0 0
        %1091 = vmatpush1.bf16.msra.mxu0 0
        %1092 = vmatprep.subr.bf16.mxu0 0
        %1093 = vmatpush1.bf16.msra.mxu0 0
        %1094 = vmatprep.mubr.bf16.mxu0 0
        %1095 = vmatmul.mubr.bf16.gmra.mrb[0].mxu0 %v1057
        %v1096 = vpop.f32.mrb[0].mxu0
        %v1097 = vadd.f32 0.0, %v1096
        %v1098 = vpop.f32.mrb[0].mxu0
        %v1099 = vpop.f32.mrb[0].mxu0
        %v1100 = vpop.f32.mrb[0].mxu0
        %1101 = vdwg.mxu0
        %v1102 = vrcp.pop %v1052
        %v1103 = vmul.f32 %v1097, %v1102
        %1105 = vrot.lane.b32.xlu0 %v1103, 24
        %v1106 = vpop.permute.xlu0 %1105
        %vm1108 = vcmask 261312
        %1109 = vst.msk [vmem:[#allocation2] sm:$0xff] %vm1108, %v1106
        %v1110 = vld [vmem:[#allocation2] sm:$0xff]
        %v1111 = vpack.c.bf16 %v1110, %v1110
        %v1112 = vld [vmem:[#allocation11] sm:$0xf]
        %v1113 = vld [vmem:[#allocation11 + $0x4] sm:$0xf]
        %v1114 = vld [vmem:[#allocation11 + $0x8] sm:$0xf]
        %v1115 = vld [vmem:[#allocation11 + $0xc] sm:$0xf]
        %v1116 = vld [vmem:[%s8] sm:$0x1]
        %v1118 = vlaneseq
        %v1119 = vshrl.u32 %v1118, 7
        %v1120 = vsub.s32 0, %v1119
        %v1121 = vrot.slane %v1116, %v1120
        %v1127 = vunpack.c.l.b16 %v1112
        %v1128 = vunpack.c.l.b16 %v1113
        %v1129 = vunpack.c.l.b16 %v1114
        %v1130 = vunpack.c.l.b16 %v1115
        %v1131 = vpack.c.b16 %v1128, %v1127
        %v1132 = vpack.c.b16 %v1130, %v1129
        %v1136 = vsel %vm522, %v1111, 0
        %1138 = vmatprep.subr.bf16.mxu0 0
        %1139 = vmatpush1.bf16.msra.mxu0 %v1131
        %1140 = vmatprep.subr.bf16.mxu0 0
        %1141 = vmatpush1.bf16.msra.mxu0 %v1132
        %1142 = vmatprep.subr.bf16.mxu0 0
        %1143 = vmatpush1.bf16.msra.mxu0 0
        %1144 = vmatprep.subr.bf16.mxu0 0
        %1145 = vmatpush1.bf16.msra.mxu0 0
        %1146 = vmatprep.subr.bf16.mxu0 0
        %1147 = vmatpush1.bf16.msra.mxu0 0
        %1148 = vmatprep.subr.bf16.mxu0 0
        %1149 = vmatpush1.bf16.msra.mxu0 0
        %1150 = vmatprep.subr.bf16.mxu0 0
        %1151 = vmatpush1.bf16.msra.mxu0 0
        %1152 = vmatprep.subr.bf16.mxu0 0
        %1153 = vmatpush1.bf16.msra.mxu0 0
        %1154 = vmatprep.subr.bf16.mxu0 0
        %1155 = vmatpush1.bf16.msra.mxu0 0
        %1156 = vmatprep.subr.bf16.mxu0 0
        %1157 = vmatpush1.bf16.msra.mxu0 0
        %1158 = vmatprep.subr.bf16.mxu0 0
        %1159 = vmatpush1.bf16.msra.mxu0 0
        %1160 = vmatprep.subr.bf16.mxu0 0
        %1161 = vmatpush1.bf16.msra.mxu0 0
        %1162 = vmatprep.subr.bf16.mxu0 0
        %1163 = vmatpush1.bf16.msra.mxu0 0
        %1164 = vmatprep.subr.bf16.mxu0 0
        %1165 = vmatpush1.bf16.msra.mxu0 0
        %1166 = vmatprep.subr.bf16.mxu0 0
        %1167 = vmatpush1.bf16.msra.mxu0 0
        %1168 = vmatprep.subr.bf16.mxu0 0
        %1169 = vmatpush1.bf16.msra.mxu0 0
        %1170 = vmatprep.mubr.bf16.mxu0 0
        %1171 = vmatmul.mubr.bf16.gmra.mrb[0].mxu0 %v1136
        %v1172 = vpop.f32.mrb[0].mxu0
        %v1173 = vadd.f32 %v1121, %v1172
        %v1174 = vpop.f32.mrb[0].mxu0
        %v1175 = vpop.f32.mrb[0].mxu0
        %v1176 = vpop.f32.mrb[0].mxu0
        %1177 = vdwg.mxu0
        %v1178 = vadd.f32 %v495, %v1173
        %v1179 = vsel %vm522, %v1178, 0.0
        %1180 = vadd.xlane.f32.xlu0 %v1179
        %v1181 = vpop.xlane.xlu0 %1180
        %v1182 = vmul.f32 %v1181, 0.03125
        %v1183 = vsub.f32 %v1178, %v1182
        %v1184 = vmul.f32 %v1183, %v1183
        %v1185 = vsel %vm522, %v1184, 0.0
        %1186 = vadd.xlane.f32.xlu0 %v1185
        %v1187 = vpop.xlane.xlu0 %1186
        %v1188 = vmul.f32 %v1187, 0.03125
        %v1189 = vadd.f32 %v1188, 1e-05
        %v1190 = vrsqrt.pop %v1189
        %v1191 = vmul.f32 %v1183, %v1190
        %v1192 = vld [vmem:[%s9] sm:$0x1]
        %v1194 = vlaneseq
        %v1195 = vshrl.u32 %v1194, 7
        %v1196 = vsub.s32 0, %v1195
        %v1197 = vrot.slane %v1192, %v1196
        %v1199 = vmul.f32 %v1191, %v1197
        %v1200 = vld [vmem:[%s10] sm:$0x1]
        %v1202 = vlaneseq
        %v1203 = vshrl.u32 %v1202, 7
        %v1204 = vsub.s32 0, %v1203
        %v1205 = vrot.slane %v1200, %v1204
        %v1207 = vadd.f32 %v1199, %v1205
        %1208 = vst.msk [vmem:[%s490] sm:$0xff] %vm522, %v1207
        %s1209 = sand.u32 %s286, 1
        %s1210 = scalar_lea.sflag [#allocation5], %s1209
        %s1211 = sand.u32 %s286, 1
        %s1212 = smul.addr %s1211, 8
        %s1213 = scalar_lea.vmem [#allocation12], %s1212
        // Predicated region
        $region85: #{tpu_custom_call.1} parent=63 // pred_check
          %p1214 = pneg %p296
        $region86: #{tpu_custom_call.1} parent=63 // pred_check_branch
          %1216 = sbr.rel (%p1214) target = $region88
        $region87: #{tpu_custom_call.1} parent=63 // pred_region
          %s1218 = ssub.s32 128, 128
          %1219 = vsyncadd %s1210, %s1218
          %s1220 = smul.addr %s32, 128
          %s1221 = scalar_lea.hbm %s11, %s1220
          %s1223 = sshll.u32 %s1213, 4
          %s1224 = int_to_ptr.vmem [resolvable:$true] %s1223
          %1226 = dma.vmem_to_hbm [thread:$0]  %s1224, 128, %s1221, %s1210
        $region88: #{tpu_custom_call.1} parent=63 // pred_fallthru
          _
      $region64: #{tpu_custom_call.1} parent=5 // pred_fallthru
        _
      %p1227 = scmp.le.s32.totalorder 2, %s27
      // Predicated region
      $region89: #{tpu_custom_call.1} parent=5 // pred_check
        %p1228 = pneg %p1227
      $region90: #{tpu_custom_call.1} parent=5 // pred_check_branch
        %1230 = sbr.rel (%p1228) target = $region92
      $region91: #{tpu_custom_call.1} parent=5 // pred_region
        %s1231 = ssub.s32 %s27, 2
        // Predicated region
        $region93: #{tpu_custom_call.1} parent=91 // pred_check
          %p1232 = pneg %p302
        $region94: #{tpu_custom_call.1} parent=91 // pred_check_branch
          %1234 = sbr.rel (%p1232) target = $region96
        $region95: #{tpu_custom_call.1} parent=91 // pred_region
          %s1235 = sand.u32 %s287, 1
          %s1236 = scalar_lea.sflag [#allocation5], %s1235
          %s1237 = sand.u32 %s287, 1
          %s1238 = smul.addr %s1237, 8
          %s1239 = scalar_lea.vmem [#allocation12], %s1238
          %1240 = dma.done %s1236, 128
        $region96: #{tpu_custom_call.1} parent=91 // pred_fallthru
          _
      $region92: #{tpu_custom_call.1} parent=5 // pred_fallthru
        _
    $region6: #{tpu_custom_call.1} parent=1 // loop_footer
      %s31 = sadd.s32 1, %s27
    $region7: #{tpu_custom_call.1} parent=1 // loop_footer_branch
      %26 = sbr.rel target = $region3
    $region8: #{tpu_custom_call.1} parent=1 // loop_exit
      _
    %1241 = vsyncpa [#allocation4], 1
    %s1242 = scalar_lea.sflag [#allocation4], 1
    %1243 = vsyncpa %s1242, 1
    %1244 = vsyncpa [#allocation7], 1
    %s1245 = scalar_lea.sflag [#allocation7], 1
    %1246 = vsyncpa %s1245, 1
    %1247 = vsyncpa [#allocation10], 1
    %1248 = vsyncpa [#allocation5], 1
    %s1249 = scalar_lea.sflag [#allocation5], 1
    %1250 = vsyncpa %s1249, 1

</llo_original>
